<compile_context>
chip_gen: v6e
topology: v6e:2x2x1
jax: 0.10.0
libtpu: 0.0.40
codegen_flags: <defaults>
</compile_context>

<pallas_src>
import jax
import jax.numpy as jnp
from jax.experimental import pallas as pl
from jax.experimental.pallas import tpu as pltpu

S_IN = 5          # input features
H1 = 500          # fc1 output features
H1_PAD = 512      # fc1 output padded to a multiple of 128
H2 = 128          # fc2 output features
OUT_PAD = 8       # fc3 output padded 1 -> 8 sublanes
TILE_B_MAX = 512  # batch-tile (lane) width


def _round_up(x, m):
    return (x + m - 1) // m * m


def mlp_kernel(xt_ref, w1_ref, b1_ref, w2_ref, b2_ref, w3_ref, b3_ref, ot_ref):
    xt = xt_ref[...]                                           # (5, TB) f32

    # fc1 + ReLU: (512, 5) @ (5, TB) -> (512, TB), f32 accumulate on the MXU.
    h1 = jnp.dot(w1_ref[...], xt, preferred_element_type=jnp.float32)
    h1 = jnp.maximum(h1 + b1_ref[...], 0.0)

    # fc2 + ReLU: bf16 MXU inputs, f32 accumulate.
    h2 = jnp.dot(w2_ref[...], h1.astype(jnp.bfloat16),
                 preferred_element_type=jnp.float32)
    h2 = jnp.maximum(h2 + b2_ref[...], 0.0)                    # (128, TB)

    # fc3 (no activation): (8, 128) @ (128, TB) -> (8, TB); row 0 is real,
    # rows 1..7 are zero-padding.  Lane-dense, (8,128)-aligned store.
    out = jnp.dot(w3_ref[...], h2.astype(jnp.bfloat16),
                  preferred_element_type=jnp.float32)
    ot_ref[...] = out + b3_ref[...]


def prepare_params(params):
    """Pad / reshape / cast torch-convention params for the kernel (done once).

    Weights stay in the torch (out_features, in_features) layout.  Padding is
    exact zeros so the forward pass is numerically identical to the module.
    """
    w1, b1 = params["w1"], params["b1"]      # (500, 5), (500,)
    w2, b2 = params["w2"], params["b2"]      # (128, 500), (128,)
    w3, b3 = params["w3"], params["b3"]      # (1, 128), (1,)
    hpad = H1_PAD - H1
    w1p = jnp.pad(w1, ((0, hpad), (0, 0))).astype(jnp.float32)            # (512, 5)
    b1p = jnp.pad(b1, ((0, hpad),)).reshape(H1_PAD, 1).astype(jnp.float32)
    w2p = jnp.pad(w2, ((0, 0), (0, hpad))).astype(jnp.bfloat16)           # (128, 512)
    b2p = b2.reshape(H2, 1).astype(jnp.float32)
    w3p = jnp.pad(w3, ((0, OUT_PAD - 1), (0, 0))).astype(jnp.bfloat16)    # (8, 128)
    b3p = jnp.pad(b3, ((0, OUT_PAD - 1),)).reshape(OUT_PAD, 1).astype(jnp.float32)
    return {"w1": w1p, "b1": b1p, "w2": w2p, "b2": b2p, "w3": w3p, "b3": b3p}


def cpmodel_forward(x, p):
    """x: (B, 5) float32.  p: prepared params (see prepare_params)."""
    B = x.shape[0]
    tile_b = min(TILE_B_MAX, _round_up(B, 128))   # lane-aligned batch tile
    b_pad = _round_up(B, tile_b)
    n_tiles = b_pad // tile_b

    # batch-in-lanes layout, zero-padded to a whole number of tiles
    xt = jnp.pad(x.astype(jnp.float32).T, ((0, 0), (0, b_pad - B)))   # (5, b_pad)

    flops = 2 * b_pad * (S_IN * H1_PAD + H1_PAD * H2 + H2 * OUT_PAD)
    bytes_accessed = (
        xt.size * 4
        + p["w1"].size * 4 + p["b1"].size * 4
        + p["w2"].size * 2 + p["b2"].size * 4
        + p["w3"].size * 2 + p["b3"].size * 4
        + OUT_PAD * b_pad * 4
    )

    out_t = pl.pallas_call(
        mlp_kernel,
        out_shape=jax.ShapeDtypeStruct((OUT_PAD, b_pad), jnp.float32),
        grid=(n_tiles,),
        in_specs=[
            pl.BlockSpec((S_IN, tile_b), lambda i: (0, i)),     # x^T batch tile
            pl.BlockSpec((H1_PAD, S_IN), lambda i: (0, 0)),     # w1 (resident)
            pl.BlockSpec((H1_PAD, 1), lambda i: (0, 0)),        # b1 (resident)
            pl.BlockSpec((H2, H1_PAD), lambda i: (0, 0)),       # w2 (resident, bf16)
            pl.BlockSpec((H2, 1), lambda i: (0, 0)),            # b2 (resident)
            pl.BlockSpec((OUT_PAD, H2), lambda i: (0, 0)),      # w3 (resident, bf16)
            pl.BlockSpec((OUT_PAD, 1), lambda i: (0, 0)),       # b3 (resident)
        ],
        out_specs=pl.BlockSpec((OUT_PAD, tile_b), lambda i: (0, i)),
        compiler_params=pltpu.CompilerParams(
            dimension_semantics=("parallel",),
            vmem_limit_bytes=32 << 20,
        ),
        cost_estimate=pl.CostEstimate(
            flops=flops, transcendentals=0, bytes_accessed=bytes_accessed),
    )(xt, p["w1"], p["b1"], p["w2"], p["b2"], p["w3"], p["b3"])

    # row 0 of the padded head, first B batch columns -> (B, 1)
    return out_t[0, :B].reshape(B, 1)


def init_params(key):
    """torch.nn.Linear-style init: U(-1/sqrt(fan_in), +1/sqrt(fan_in)).
    Weights stored in the torch (out_features, in_features) layout."""
    def linear(k, fan_in, fan_out):
        kw, kb = jax.random.split(k)
        bound = 1.0 / (fan_in ** 0.5)
        w = jax.random.uniform(kw, (fan_out, fan_in), jnp.float32, -bound, bound)
        b = jax.random.uniform(kb, (fan_out,), jnp.float32, -bound, bound)
        return w, b

    k1, k2, k3 = jax.random.split(key, 3)
    w1, b1 = linear(k1, S_IN, H1)
    w2, b2 = linear(k2, H1, H2)
    w3, b3 = linear(k3, H2, 1)
    return {"w1": w1, "b1": b1, "w2": w2, "b2": b2, "w3": w3, "b3": b3}


def cpmodel_reference(x, params):
    """Pure-JAX f32 reference matching the torch forward pass."""
    h = jnp.maximum(x @ params["w1"].T + params["b1"], 0.0)
    h = jnp.maximum(h @ params["w2"].T + params["b2"], 0.0)
    return h @ params["w3"].T + params["b3"]


if __name__ == "__main__":
    key = jax.random.PRNGKey(0)
    kp, kx = jax.random.split(key)

    params = init_params(kp)
    prepped = prepare_params(params)

    batch = 8
    x = jax.random.normal(kx, (batch, S_IN), dtype=jnp.float32)

    out = jax.block_until_ready(cpmodel_forward(x, prepped))
    ref = cpmodel_reference(x, params)

    assert out.shape == (batch, 1), out.shape
    max_err = float(jnp.max(jnp.abs(out - ref)))
    # fc2/fc3 run with bf16 matmul inputs (f32 accumulate); tolerance covers that.
    assert max_err < 2e-2, f"max abs err = {max_err}"

    print("KERNEL_OK")
</pallas_src>

<mosaic_0001>
module attributes {stable_mosaic.version = 11 : i64} {
  func.func @mlp_kernel(%arg0: i32, %arg1: memref<5x128xf32, #tpu.memory_space<vmem>>, %arg2: memref<512x5xf32, #tpu.memory_space<vmem>>, %arg3: memref<512x1xf32, #tpu.memory_space<vmem>>, %arg4: memref<128x512xbf16, #tpu.memory_space<vmem>>, %arg5: memref<128x1xf32, #tpu.memory_space<vmem>>, %arg6: memref<8x128xbf16, #tpu.memory_space<vmem>>, %arg7: memref<8x1xf32, #tpu.memory_space<vmem>>, %arg8: memref<8x128xf32, #tpu.memory_space<vmem>>) attributes {dimension_semantics = [#tpu.dimension_semantics<parallel>], iteration_bounds = array<i64: 1>, scalar_prefetch = 0 : i64, scratch_operands = 0 : i64, tpu.core_type = #tpu.core_type<tc>, window_params = [{transform_indices = @transform_0, window_bounds = array<i64: 5, 128>}, {pipeline_mode = #tpu.pipeline_mode<synchronous>, transform_indices = @transform_1, window_bounds = array<i64: 512, 5>}, {pipeline_mode = #tpu.pipeline_mode<synchronous>, transform_indices = @transform_2, window_bounds = array<i64: 512, 1>}, {pipeline_mode = #tpu.pipeline_mode<synchronous>, transform_indices = @transform_3, window_bounds = array<i64: 128, 512>}, {pipeline_mode = #tpu.pipeline_mode<synchronous>, transform_indices = @transform_4, window_bounds = array<i64: 128, 1>}, {pipeline_mode = #tpu.pipeline_mode<synchronous>, transform_indices = @transform_5, window_bounds = array<i64: 8, 128>}, {pipeline_mode = #tpu.pipeline_mode<synchronous>, transform_indices = @transform_6, window_bounds = array<i64: 8, 1>}, {transform_indices = @transform_7, window_bounds = array<i64: 8, 128>}]} {
    %c0 = arith.constant 0 : index
    %c0_0 = arith.constant 0 : index
    %0 = vector.load %arg1[%c0, %c0_0] : memref<5x128xf32, #tpu.memory_space<vmem>>, vector<5x128xf32>
    %c0_1 = arith.constant 0 : index
    %c0_2 = arith.constant 0 : index
    %1 = vector.load %arg2[%c0_1, %c0_2] : memref<512x5xf32, #tpu.memory_space<vmem>>, vector<512x5xf32>
    %cst = arith.constant dense<0.000000e+00> : vector<512x128xf32>
    %2 = tpu.matmul %1, %0, %cst {dimension_numbers = #tpu.dot_dimension_numbers<[1], [0], [0], [1], [0, 0, 1, 1], [], []>} : vector<512x5xf32>, vector<5x128xf32>, vector<512x128xf32> -> vector<512x128xf32>
    %c0_3 = arith.constant 0 : index
    %c0_4 = arith.constant 0 : index
    %3 = vector.load %arg3[%c0_3, %c0_4] : memref<512x1xf32, #tpu.memory_space<vmem>>, vector<512x1xf32>
    %4 = vector.broadcast %3 : vector<512x1xf32> to vector<512x128xf32>
    %5 = arith.addf %2, %4 : vector<512x128xf32>
    %cst_5 = arith.constant 0.000000e+00 : f32
    %6 = vector.broadcast %cst_5 : f32 to vector<512x128xf32>
    %7 = arith.maximumf %5, %6 : vector<512x128xf32>
    %c0_6 = arith.constant 0 : index
    %c0_7 = arith.constant 0 : index
    %8 = vector.load %arg4[%c0_6, %c0_7] : memref<128x512xbf16, #tpu.memory_space<vmem>>, vector<128x512xbf16>
    %9 = arith.truncf %7 : vector<512x128xf32> to vector<512x128xbf16>
    %cst_8 = arith.constant dense<0.000000e+00> : vector<128x128xf32>
    %10 = tpu.matmul %8, %9, %cst_8 {dimension_numbers = #tpu.dot_dimension_numbers<[1], [0], [0], [1], [0, 0, 1, 1], [], []>} : vector<128x512xbf16>, vector<512x128xbf16>, vector<128x128xf32> -> vector<128x128xf32>
    %c0_9 = arith.constant 0 : index
    %c0_10 = arith.constant 0 : index
    %11 = vector.load %arg5[%c0_9, %c0_10] : memref<128x1xf32, #tpu.memory_space<vmem>>, vector<128x1xf32>
    %12 = vector.broadcast %11 : vector<128x1xf32> to vector<128x128xf32>
    %13 = arith.addf %10, %12 : vector<128x128xf32>
    %cst_11 = arith.constant 0.000000e+00 : f32
    %14 = vector.broadcast %cst_11 : f32 to vector<128x128xf32>
    %15 = arith.maximumf %13, %14 : vector<128x128xf32>
    %c0_12 = arith.constant 0 : index
    %c0_13 = arith.constant 0 : index
    %16 = vector.load %arg6[%c0_12, %c0_13] : memref<8x128xbf16, #tpu.memory_space<vmem>>, vector<8x128xbf16>
    %17 = arith.truncf %15 : vector<128x128xf32> to vector<128x128xbf16>
    %cst_14 = arith.constant dense<0.000000e+00> : vector<8x128xf32>
    %18 = tpu.matmul %16, %17, %cst_14 {dimension_numbers = #tpu.dot_dimension_numbers<[1], [0], [0], [1], [0, 0, 1, 1], [], []>} : vector<8x128xbf16>, vector<128x128xbf16>, vector<8x128xf32> -> vector<8x128xf32>
    %c0_15 = arith.constant 0 : index
    %c0_16 = arith.constant 0 : index
    %19 = vector.load %arg7[%c0_15, %c0_16] : memref<8x1xf32, #tpu.memory_space<vmem>>, vector<8x1xf32>
    %20 = vector.broadcast %19 : vector<8x1xf32> to vector<8x128xf32>
    %21 = arith.addf %18, %20 : vector<8x128xf32>
    %c0_17 = arith.constant 0 : index
    %c0_18 = arith.constant 0 : index
    %22 = vector.load %arg8[%c0_17, %c0_18] : memref<8x128xf32, #tpu.memory_space<vmem>>, vector<8x128xf32>
    tpu.vector_store %arg8[%c0_17, %c0_18], %21 {strides = array<i32>} : memref<8x128xf32, #tpu.memory_space<vmem>>, vector<8x128xf32>,
    return
  }
  func.func @transform_0(%arg0: i32) -> (i32, i32) {
    %c0_i32 = arith.constant 0 : i32
    %c0_i32_0 = arith.constant 0 : i32
    return %c0_i32, %arg0 : i32, i32
  }
  func.func @transform_1(%arg0: i32) -> (i32, i32) {
    %c0_i32 = arith.constant 0 : i32
    %c0_i32_0 = arith.constant 0 : i32
    %c0_i32_1 = arith.constant 0 : i32
    return %c0_i32, %c0_i32_0 : i32, i32
  }
  func.func @transform_2(%arg0: i32) -> (i32, i32) {
    %c0_i32 = arith.constant 0 : i32
    %c0_i32_0 = arith.constant 0 : i32
    %c0_i32_1 = arith.constant 0 : i32
    return %c0_i32, %c0_i32_0 : i32, i32
  }
  func.func @transform_3(%arg0: i32) -> (i32, i32) {
    %c0_i32 = arith.constant 0 : i32
    %c0_i32_0 = arith.constant 0 : i32
    %c0_i32_1 = arith.constant 0 : i32
    return %c0_i32, %c0_i32_0 : i32, i32
  }
  func.func @transform_4(%arg0: i32) -> (i32, i32) {
    %c0_i32 = arith.constant 0 : i32
    %c0_i32_0 = arith.constant 0 : i32
    %c0_i32_1 = arith.constant 0 : i32
    return %c0_i32, %c0_i32_0 : i32, i32
  }
  func.func @transform_5(%arg0: i32) -> (i32, i32) {
    %c0_i32 = arith.constant 0 : i32
    %c0_i32_0 = arith.constant 0 : i32
    %c0_i32_1 = arith.constant 0 : i32
    return %c0_i32, %c0_i32_0 : i32, i32
  }
  func.func @transform_6(%arg0: i32) -> (i32, i32) {
    %c0_i32 = arith.constant 0 : i32
    %c0_i32_0 = arith.constant 0 : i32
    %c0_i32_1 = arith.constant 0 : i32
    return %c0_i32, %c0_i32_0 : i32, i32
  }
  func.func @transform_7(%arg0: i32) -> (i32, i32) {
    %c0_i32 = arith.constant 0 : i32
    %c0_i32_0 = arith.constant 0 : i32
    return %c0_i32, %arg0 : i32, i32
  }
}

</mosaic_0001>

<llo_original>
// kernel: tpu_custom_call.1
$region0: #{tpu_custom_call.1}
  #allocation0 [shape = 'u32[]', space=smem, size = 0x4, offset = 0x4, fixed_abs, tag = 'smem constant byte address 0x4 - core index']
  #allocation1 [shape = 'u32[144,128]{1,0:T(1,128)}', space=vmem, size = 0x12000, scoped, tag = 'internal scratch']
  %s0 = inlined_call_operand.vmem [shape: f32[5,128], index: 0, kind: input, shape index: {}]
  %s1 = inlined_call_operand.vmem [shape: f32[512,5], index: 1, kind: input, shape index: {}]
  %s2 = inlined_call_operand.vmem [shape: f32[512,1], index: 2, kind: input, shape index: {}]
  %s3 = inlined_call_operand.vmem [shape: bf16[128,512], index: 3, kind: input, shape index: {}]
  %s4 = inlined_call_operand.vmem [shape: f32[128,1], index: 4, kind: input, shape index: {}]
  %s5 = inlined_call_operand.vmem [shape: bf16[8,128], index: 5, kind: input, shape index: {}]
  %s6 = inlined_call_operand.vmem [shape: f32[8,1], index: 6, kind: input, shape index: {}]
  %s7 = inlined_call_operand.hbm [shape: f32[8,128], index: 7, kind: output, shape index: {}]
  %s8 = sld [smem:[#allocation0]]
  $region38: #{tpu_custom_call.1} parent=0
    _
  %s10 = ssub.s32 1, %s8
  %s11 = scalar_select 0, %s10, %s8
  $region1: #{tpu_custom_call.1} parent=0
    #allocation2 [shape = 'u8[4096]{0}', space=vmem, size = 0x1000, scoped, tag = 'output window, operand 0, single buffered']
    #allocation3 [shape = 's32[1]{0}', space=sflag, size = 0x4, scoped, tag = 'scoped memory for tpu_custom_call.1']
    %12 = vsyncpa [#allocation3], 0
    // Predicated region
    $region2: #{tpu_custom_call.1} parent=1 // pred_check
      _
    $region3: #{tpu_custom_call.1} parent=1 // pred_check_branch
      %14 = sbr.rel (0) target = $region5
    $region4: #{tpu_custom_call.1} parent=1 // pred_region
      _
    $region5: #{tpu_custom_call.1} parent=1 // pred_fallthru
      _
    // Predicated region
    $region6: #{tpu_custom_call.1} parent=1 // pred_check
      _
    $region7: #{tpu_custom_call.1} parent=1 // pred_check_branch
      %16 = sbr.rel (0) target = $region9
    $region8: #{tpu_custom_call.1} parent=1 // pred_region
      _
    $region9: #{tpu_custom_call.1} parent=1 // pred_fallthru
      _
    // Predicated region
    $region10: #{tpu_custom_call.1} parent=1 // pred_check
      _
    $region11: #{tpu_custom_call.1} parent=1 // pred_check_branch
      %18 = sbr.rel (0) target = $region13
    $region12: #{tpu_custom_call.1} parent=1 // pred_region
      _
    $region13: #{tpu_custom_call.1} parent=1 // pred_fallthru
      _
    // Predicated region
    $region14: #{tpu_custom_call.1} parent=1 // pred_check
      _
    $region15: #{tpu_custom_call.1} parent=1 // pred_check_branch
      %20 = sbr.rel (0) target = $region17
    $region16: #{tpu_custom_call.1} parent=1 // pred_region
      _
    $region17: #{tpu_custom_call.1} parent=1 // pred_fallthru
      _
    // Predicated region
    $region18: #{tpu_custom_call.1} parent=1 // pred_check
      _
    $region19: #{tpu_custom_call.1} parent=1 // pred_check_branch
      %22 = sbr.rel (0) target = $region21
    $region20: #{tpu_custom_call.1} parent=1 // pred_region
      _
    $region21: #{tpu_custom_call.1} parent=1 // pred_fallthru
      _
    // Predicated region
    $region22: #{tpu_custom_call.1} parent=1 // pred_check
      _
    $region23: #{tpu_custom_call.1} parent=1 // pred_check_branch
      %24 = sbr.rel (0) target = $region25
    $region24: #{tpu_custom_call.1} parent=1 // pred_region
      _
    $region25: #{tpu_custom_call.1} parent=1 // pred_fallthru
      _
    // Predicated region
    $region26: #{tpu_custom_call.1} parent=1 // pred_check
      _
    $region27: #{tpu_custom_call.1} parent=1 // pred_check_branch
      %26 = sbr.rel (0) target = $region29
    $region28: #{tpu_custom_call.1} parent=1 // pred_region
      _
    $region29: #{tpu_custom_call.1} parent=1 // pred_fallthru
      _
    %v28 = vld [vmem:[%s0] sm:$0x1f]
    %v29 = vld [vmem:[%s1] sm:$0xff]
    %v30 = vld [vmem:[%s1 + $0x8] sm:$0xff]
    %v31 = vld [vmem:[%s1 + $0x10] sm:$0xff]
    %v32 = vld [vmem:[%s1 + $0x18] sm:$0xff]
    %v33 = vld [vmem:[%s1 + $0x20] sm:$0xff]
    %v34 = vld [vmem:[%s1 + $0x28] sm:$0xff]
    %v35 = vld [vmem:[%s1 + $0x30] sm:$0xff]
    %v36 = vld [vmem:[%s1 + $0x38] sm:$0xff]
    %v37 = vld [vmem:[%s1 + $0x40] sm:$0xff]
    %v38 = vld [vmem:[%s1 + $0x48] sm:$0xff]
    %v39 = vld [vmem:[%s1 + $0x50] sm:$0xff]
    %v40 = vld [vmem:[%s1 + $0x58] sm:$0xff]
    %v41 = vld [vmem:[%s1 + $0x60] sm:$0xff]
    %v42 = vld [vmem:[%s1 + $0x68] sm:$0xff]
    %v43 = vld [vmem:[%s1 + $0x70] sm:$0xff]
    %v44 = vld [vmem:[%s1 + $0x78] sm:$0xff]
    %v45 = vld [vmem:[%s1 + $0x80] sm:$0xff]
    %v46 = vld [vmem:[%s1 + $0x88] sm:$0xff]
    %v47 = vld [vmem:[%s1 + $0x90] sm:$0xff]
    %v48 = vld [vmem:[%s1 + $0x98] sm:$0xff]
    %v49 = vld [vmem:[%s1 + $0xa0] sm:$0xff]
    %v50 = vld [vmem:[%s1 + $0xa8] sm:$0xff]
    %v51 = vld [vmem:[%s1 + $0xb0] sm:$0xff]
    %v52 = vld [vmem:[%s1 + $0xb8] sm:$0xff]
    %v53 = vld [vmem:[%s1 + $0xc0] sm:$0xff]
    %v54 = vld [vmem:[%s1 + $0xc8] sm:$0xff]
    %v55 = vld [vmem:[%s1 + $0xd0] sm:$0xff]
    %v56 = vld [vmem:[%s1 + $0xd8] sm:$0xff]
    %v57 = vld [vmem:[%s1 + $0xe0] sm:$0xff]
    %v58 = vld [vmem:[%s1 + $0xe8] sm:$0xff]
    %v59 = vld [vmem:[%s1 + $0xf0] sm:$0xff]
    %v60 = vld [vmem:[%s1 + $0xf8] sm:$0xff]
    %v61 = vld [vmem:[%s1 + $0x100] sm:$0xff]
    %v62 = vld [vmem:[%s1 + $0x108] sm:$0xff]
    %v63 = vld [vmem:[%s1 + $0x110] sm:$0xff]
    %v64 = vld [vmem:[%s1 + $0x118] sm:$0xff]
    %v65 = vld [vmem:[%s1 + $0x120] sm:$0xff]
    %v66 = vld [vmem:[%s1 + $0x128] sm:$0xff]
    %v67 = vld [vmem:[%s1 + $0x130] sm:$0xff]
    %v68 = vld [vmem:[%s1 + $0x138] sm:$0xff]
    %v69 = vld [vmem:[%s1 + $0x140] sm:$0xff]
    %v70 = vld [vmem:[%s1 + $0x148] sm:$0xff]
    %v71 = vld [vmem:[%s1 + $0x150] sm:$0xff]
    %v72 = vld [vmem:[%s1 + $0x158] sm:$0xff]
    %v73 = vld [vmem:[%s1 + $0x160] sm:$0xff]
    %v74 = vld [vmem:[%s1 + $0x168] sm:$0xff]
    %v75 = vld [vmem:[%s1 + $0x170] sm:$0xff]
    %v76 = vld [vmem:[%s1 + $0x178] sm:$0xff]
    %v77 = vld [vmem:[%s1 + $0x180] sm:$0xff]
    %v78 = vld [vmem:[%s1 + $0x188] sm:$0xff]
    %v79 = vld [vmem:[%s1 + $0x190] sm:$0xff]
    %v80 = vld [vmem:[%s1 + $0x198] sm:$0xff]
    %v81 = vld [vmem:[%s1 + $0x1a0] sm:$0xff]
    %v82 = vld [vmem:[%s1 + $0x1a8] sm:$0xff]
    %v83 = vld [vmem:[%s1 + $0x1b0] sm:$0xff]
    %v84 = vld [vmem:[%s1 + $0x1b8] sm:$0xff]
    %v85 = vld [vmem:[%s1 + $0x1c0] sm:$0xff]
    %v86 = vld [vmem:[%s1 + $0x1c8] sm:$0xff]
    %v87 = vld [vmem:[%s1 + $0x1d0] sm:$0xff]
    %v88 = vld [vmem:[%s1 + $0x1d8] sm:$0xff]
    %v89 = vld [vmem:[%s1 + $0x1e0] sm:$0xff]
    %v90 = vld [vmem:[%s1 + $0x1e8] sm:$0xff]
    %v91 = vld [vmem:[%s1 + $0x1f0] sm:$0xff]
    %v92 = vld [vmem:[%s1 + $0x1f8] sm:$0xff]
    %v93 = vld [vmem:[%s2] sm:$0xff]
    %v94 = vld [vmem:[%s2 + $0x8] sm:$0xff]
    %v95 = vld [vmem:[%s2 + $0x10] sm:$0xff]
    %v96 = vld [vmem:[%s2 + $0x18] sm:$0xff]
    %v97 = vld [vmem:[%s2 + $0x20] sm:$0xff]
    %v98 = vld [vmem:[%s2 + $0x28] sm:$0xff]
    %v99 = vld [vmem:[%s2 + $0x30] sm:$0xff]
    %v100 = vld [vmem:[%s2 + $0x38] sm:$0xff]
    %v101 = vld [vmem:[%s2 + $0x40] sm:$0xff]
    %v102 = vld [vmem:[%s2 + $0x48] sm:$0xff]
    %v103 = vld [vmem:[%s2 + $0x50] sm:$0xff]
    %v104 = vld [vmem:[%s2 + $0x58] sm:$0xff]
    %v105 = vld [vmem:[%s2 + $0x60] sm:$0xff]
    %v106 = vld [vmem:[%s2 + $0x68] sm:$0xff]
    %v107 = vld [vmem:[%s2 + $0x70] sm:$0xff]
    %v108 = vld [vmem:[%s2 + $0x78] sm:$0xff]
    %v109 = vld [vmem:[%s2 + $0x80] sm:$0xff]
    %v110 = vld [vmem:[%s2 + $0x88] sm:$0xff]
    %v111 = vld [vmem:[%s2 + $0x90] sm:$0xff]
    %v112 = vld [vmem:[%s2 + $0x98] sm:$0xff]
    %v113 = vld [vmem:[%s2 + $0xa0] sm:$0xff]
    %v114 = vld [vmem:[%s2 + $0xa8] sm:$0xff]
    %v115 = vld [vmem:[%s2 + $0xb0] sm:$0xff]
    %v116 = vld [vmem:[%s2 + $0xb8] sm:$0xff]
    %v117 = vld [vmem:[%s2 + $0xc0] sm:$0xff]
    %v118 = vld [vmem:[%s2 + $0xc8] sm:$0xff]
    %v119 = vld [vmem:[%s2 + $0xd0] sm:$0xff]
    %v120 = vld [vmem:[%s2 + $0xd8] sm:$0xff]
    %v121 = vld [vmem:[%s2 + $0xe0] sm:$0xff]
    %v122 = vld [vmem:[%s2 + $0xe8] sm:$0xff]
    %v123 = vld [vmem:[%s2 + $0xf0] sm:$0xff]
    %v124 = vld [vmem:[%s2 + $0xf8] sm:$0xff]
    %v125 = vld [vmem:[%s2 + $0x100] sm:$0xff]
    %v126 = vld [vmem:[%s2 + $0x108] sm:$0xff]
    %v127 = vld [vmem:[%s2 + $0x110] sm:$0xff]
    %v128 = vld [vmem:[%s2 + $0x118] sm:$0xff]
    %v129 = vld [vmem:[%s2 + $0x120] sm:$0xff]
    %v130 = vld [vmem:[%s2 + $0x128] sm:$0xff]
    %v131 = vld [vmem:[%s2 + $0x130] sm:$0xff]
    %v132 = vld [vmem:[%s2 + $0x138] sm:$0xff]
    %v133 = vld [vmem:[%s2 + $0x140] sm:$0xff]
    %v134 = vld [vmem:[%s2 + $0x148] sm:$0xff]
    %v135 = vld [vmem:[%s2 + $0x150] sm:$0xff]
    %v136 = vld [vmem:[%s2 + $0x158] sm:$0xff]
    %v137 = vld [vmem:[%s2 + $0x160] sm:$0xff]
    %v138 = vld [vmem:[%s2 + $0x168] sm:$0xff]
    %v139 = vld [vmem:[%s2 + $0x170] sm:$0xff]
    %v140 = vld [vmem:[%s2 + $0x178] sm:$0xff]
    %v141 = vld [vmem:[%s2 + $0x180] sm:$0xff]
    %v142 = vld [vmem:[%s2 + $0x188] sm:$0xff]
    %v143 = vld [vmem:[%s2 + $0x190] sm:$0xff]
    %v144 = vld [vmem:[%s2 + $0x198] sm:$0xff]
    %v145 = vld [vmem:[%s2 + $0x1a0] sm:$0xff]
    %v146 = vld [vmem:[%s2 + $0x1a8] sm:$0xff]
    %v147 = vld [vmem:[%s2 + $0x1b0] sm:$0xff]
    %v148 = vld [vmem:[%s2 + $0x1b8] sm:$0xff]
    %v149 = vld [vmem:[%s2 + $0x1c0] sm:$0xff]
    %v150 = vld [vmem:[%s2 + $0x1c8] sm:$0xff]
    %v151 = vld [vmem:[%s2 + $0x1d0] sm:$0xff]
    %v152 = vld [vmem:[%s2 + $0x1d8] sm:$0xff]
    %v153 = vld [vmem:[%s2 + $0x1e0] sm:$0xff]
    %v154 = vld [vmem:[%s2 + $0x1e8] sm:$0xff]
    %v155 = vld [vmem:[%s2 + $0x1f0] sm:$0xff]
    %v156 = vld [vmem:[%s2 + $0x1f8] sm:$0xff]
    %158 = vset.pattern.permute.xlu0 0
    %159 = vperm.xlu0 %158, %v93
    %v160 = vpop.permute.xlu0 %159
    %163 = vset.pattern.permute.xlu0 0
    %164 = vperm.xlu0 %163, %v94
    %v165 = vpop.permute.xlu0 %164
    %168 = vset.pattern.permute.xlu0 0
    %169 = vperm.xlu0 %168, %v95
    %v170 = vpop.permute.xlu0 %169
    %173 = vset.pattern.permute.xlu0 0
    %174 = vperm.xlu0 %173, %v96
    %v175 = vpop.permute.xlu0 %174
    %178 = vset.pattern.permute.xlu0 0
    %179 = vperm.xlu0 %178, %v97
    %v180 = vpop.permute.xlu0 %179
    %183 = vset.pattern.permute.xlu0 0
    %184 = vperm.xlu0 %183, %v98
    %v185 = vpop.permute.xlu0 %184
    %188 = vset.pattern.permute.xlu0 0
    %189 = vperm.xlu0 %188, %v99
    %v190 = vpop.permute.xlu0 %189
    %193 = vset.pattern.permute.xlu0 0
    %194 = vperm.xlu0 %193, %v100
    %v195 = vpop.permute.xlu0 %194
    %198 = vset.pattern.permute.xlu0 0
    %199 = vperm.xlu0 %198, %v101
    %v200 = vpop.permute.xlu0 %199
    %203 = vset.pattern.permute.xlu0 0
    %204 = vperm.xlu0 %203, %v102
    %v205 = vpop.permute.xlu0 %204
    %208 = vset.pattern.permute.xlu0 0
    %209 = vperm.xlu0 %208, %v103
    %v210 = vpop.permute.xlu0 %209
    %213 = vset.pattern.permute.xlu0 0
    %214 = vperm.xlu0 %213, %v104
    %v215 = vpop.permute.xlu0 %214
    %218 = vset.pattern.permute.xlu0 0
    %219 = vperm.xlu0 %218, %v105
    %v220 = vpop.permute.xlu0 %219
    %223 = vset.pattern.permute.xlu0 0
    %224 = vperm.xlu0 %223, %v106
    %v225 = vpop.permute.xlu0 %224
    %228 = vset.pattern.permute.xlu0 0
    %229 = vperm.xlu0 %228, %v107
    %v230 = vpop.permute.xlu0 %229
    %233 = vset.pattern.permute.xlu0 0
    %234 = vperm.xlu0 %233, %v108
    %v235 = vpop.permute.xlu0 %234
    %238 = vset.pattern.permute.xlu0 0
    %239 = vperm.xlu0 %238, %v109
    %v240 = vpop.permute.xlu0 %239
    %243 = vset.pattern.permute.xlu0 0
    %244 = vperm.xlu0 %243, %v110
    %v245 = vpop.permute.xlu0 %244
    %248 = vset.pattern.permute.xlu0 0
    %249 = vperm.xlu0 %248, %v111
    %v250 = vpop.permute.xlu0 %249
    %253 = vset.pattern.permute.xlu0 0
    %254 = vperm.xlu0 %253, %v112
    %v255 = vpop.permute.xlu0 %254
    %258 = vset.pattern.permute.xlu0 0
    %259 = vperm.xlu0 %258, %v113
    %v260 = vpop.permute.xlu0 %259
    %263 = vset.pattern.permute.xlu0 0
    %264 = vperm.xlu0 %263, %v114
    %v265 = vpop.permute.xlu0 %264
    %268 = vset.pattern.permute.xlu0 0
    %269 = vperm.xlu0 %268, %v115
    %v270 = vpop.permute.xlu0 %269
    %273 = vset.pattern.permute.xlu0 0
    %274 = vperm.xlu0 %273, %v116
    %v275 = vpop.permute.xlu0 %274
    %278 = vset.pattern.permute.xlu0 0
    %279 = vperm.xlu0 %278, %v117
    %v280 = vpop.permute.xlu0 %279
    %283 = vset.pattern.permute.xlu0 0
    %284 = vperm.xlu0 %283, %v118
    %v285 = vpop.permute.xlu0 %284
    %288 = vset.pattern.permute.xlu0 0
    %289 = vperm.xlu0 %288, %v119
    %v290 = vpop.permute.xlu0 %289
    %293 = vset.pattern.permute.xlu0 0
    %294 = vperm.xlu0 %293, %v120
    %v295 = vpop.permute.xlu0 %294
    %298 = vset.pattern.permute.xlu0 0
    %299 = vperm.xlu0 %298, %v121
    %v300 = vpop.permute.xlu0 %299
    %303 = vset.pattern.permute.xlu0 0
    %304 = vperm.xlu0 %303, %v122
    %v305 = vpop.permute.xlu0 %304
    %308 = vset.pattern.permute.xlu0 0
    %309 = vperm.xlu0 %308, %v123
    %v310 = vpop.permute.xlu0 %309
    %313 = vset.pattern.permute.xlu0 0
    %314 = vperm.xlu0 %313, %v124
    %v315 = vpop.permute.xlu0 %314
    %318 = vset.pattern.permute.xlu0 0
    %319 = vperm.xlu0 %318, %v125
    %v320 = vpop.permute.xlu0 %319
    %323 = vset.pattern.permute.xlu0 0
    %324 = vperm.xlu0 %323, %v126
    %v325 = vpop.permute.xlu0 %324
    %328 = vset.pattern.permute.xlu0 0
    %329 = vperm.xlu0 %328, %v127
    %v330 = vpop.permute.xlu0 %329
    %333 = vset.pattern.permute.xlu0 0
    %334 = vperm.xlu0 %333, %v128
    %v335 = vpop.permute.xlu0 %334
    %338 = vset.pattern.permute.xlu0 0
    %339 = vperm.xlu0 %338, %v129
    %v340 = vpop.permute.xlu0 %339
    %343 = vset.pattern.permute.xlu0 0
    %344 = vperm.xlu0 %343, %v130
    %v345 = vpop.permute.xlu0 %344
    %348 = vset.pattern.permute.xlu0 0
    %349 = vperm.xlu0 %348, %v131
    %v350 = vpop.permute.xlu0 %349
    %353 = vset.pattern.permute.xlu0 0
    %354 = vperm.xlu0 %353, %v132
    %v355 = vpop.permute.xlu0 %354
    %358 = vset.pattern.permute.xlu0 0
    %359 = vperm.xlu0 %358, %v133
    %v360 = vpop.permute.xlu0 %359
    %363 = vset.pattern.permute.xlu0 0
    %364 = vperm.xlu0 %363, %v134
    %v365 = vpop.permute.xlu0 %364
    %368 = vset.pattern.permute.xlu0 0
    %369 = vperm.xlu0 %368, %v135
    %v370 = vpop.permute.xlu0 %369
    %373 = vset.pattern.permute.xlu0 0
    %374 = vperm.xlu0 %373, %v136
    %v375 = vpop.permute.xlu0 %374
    %378 = vset.pattern.permute.xlu0 0
    %379 = vperm.xlu0 %378, %v137
    %v380 = vpop.permute.xlu0 %379
    %383 = vset.pattern.permute.xlu0 0
    %384 = vperm.xlu0 %383, %v138
    %v385 = vpop.permute.xlu0 %384
    %388 = vset.pattern.permute.xlu0 0
    %389 = vperm.xlu0 %388, %v139
    %v390 = vpop.permute.xlu0 %389
    %393 = vset.pattern.permute.xlu0 0
    %394 = vperm.xlu0 %393, %v140
    %v395 = vpop.permute.xlu0 %394
    %398 = vset.pattern.permute.xlu0 0
    %399 = vperm.xlu0 %398, %v141
    %v400 = vpop.permute.xlu0 %399
    %403 = vset.pattern.permute.xlu0 0
    %404 = vperm.xlu0 %403, %v142
    %v405 = vpop.permute.xlu0 %404
    %408 = vset.pattern.permute.xlu0 0
    %409 = vperm.xlu0 %408, %v143
    %v410 = vpop.permute.xlu0 %409
    %413 = vset.pattern.permute.xlu0 0
    %414 = vperm.xlu0 %413, %v144
    %v415 = vpop.permute.xlu0 %414
    %418 = vset.pattern.permute.xlu0 0
    %419 = vperm.xlu0 %418, %v145
    %v420 = vpop.permute.xlu0 %419
    %423 = vset.pattern.permute.xlu0 0
    %424 = vperm.xlu0 %423, %v146
    %v425 = vpop.permute.xlu0 %424
    %428 = vset.pattern.permute.xlu0 0
    %429 = vperm.xlu0 %428, %v147
    %v430 = vpop.permute.xlu0 %429
    %433 = vset.pattern.permute.xlu0 0
    %434 = vperm.xlu0 %433, %v148
    %v435 = vpop.permute.xlu0 %434
    %438 = vset.pattern.permute.xlu0 0
    %439 = vperm.xlu0 %438, %v149
    %v440 = vpop.permute.xlu0 %439
    %443 = vset.pattern.permute.xlu0 0
    %444 = vperm.xlu0 %443, %v150
    %v445 = vpop.permute.xlu0 %444
    %448 = vset.pattern.permute.xlu0 0
    %449 = vperm.xlu0 %448, %v151
    %v450 = vpop.permute.xlu0 %449
    %453 = vset.pattern.permute.xlu0 0
    %454 = vperm.xlu0 %453, %v152
    %v455 = vpop.permute.xlu0 %454
    %458 = vset.pattern.permute.xlu0 0
    %459 = vperm.xlu0 %458, %v153
    %v460 = vpop.permute.xlu0 %459
    %463 = vset.pattern.permute.xlu0 0
    %464 = vperm.xlu0 %463, %v154
    %v465 = vpop.permute.xlu0 %464
    %468 = vset.pattern.permute.xlu0 0
    %469 = vperm.xlu0 %468, %v155
    %v470 = vpop.permute.xlu0 %469
    %473 = vset.pattern.permute.xlu0 0
    %474 = vperm.xlu0 %473, %v156
    %v475 = vpop.permute.xlu0 %474
    %vm477 = vcmask 39936
    %v479 = vsel %vm477, %v29, 0
    %v482 = vsel %vm477, %v30, 0
    %v485 = vsel %vm477, %v31, 0
    %v488 = vsel %vm477, %v32, 0
    %v491 = vsel %vm477, %v33, 0
    %v494 = vsel %vm477, %v34, 0
    %v497 = vsel %vm477, %v35, 0
    %v500 = vsel %vm477, %v36, 0
    %v503 = vsel %vm477, %v37, 0
    %v506 = vsel %vm477, %v38, 0
    %v509 = vsel %vm477, %v39, 0
    %v512 = vsel %vm477, %v40, 0
    %v515 = vsel %vm477, %v41, 0
    %v518 = vsel %vm477, %v42, 0
    %v521 = vsel %vm477, %v43, 0
    %v524 = vsel %vm477, %v44, 0
    %v527 = vsel %vm477, %v45, 0
    %v530 = vsel %vm477, %v46, 0
    %v533 = vsel %vm477, %v47, 0
    %v536 = vsel %vm477, %v48, 0
    %v539 = vsel %vm477, %v49, 0
    %v542 = vsel %vm477, %v50, 0
    %v545 = vsel %vm477, %v51, 0
    %v548 = vsel %vm477, %v52, 0
    %v551 = vsel %vm477, %v53, 0
    %v554 = vsel %vm477, %v54, 0
    %v557 = vsel %vm477, %v55, 0
    %v560 = vsel %vm477, %v56, 0
    %v563 = vsel %vm477, %v57, 0
    %v566 = vsel %vm477, %v58, 0
    %v569 = vsel %vm477, %v59, 0
    %v572 = vsel %vm477, %v60, 0
    %v575 = vsel %vm477, %v61, 0
    %v578 = vsel %vm477, %v62, 0
    %v581 = vsel %vm477, %v63, 0
    %v584 = vsel %vm477, %v64, 0
    %v587 = vsel %vm477, %v65, 0
    %v590 = vsel %vm477, %v66, 0
    %v593 = vsel %vm477, %v67, 0
    %v596 = vsel %vm477, %v68, 0
    %v599 = vsel %vm477, %v69, 0
    %v602 = vsel %vm477, %v70, 0
    %v605 = vsel %vm477, %v71, 0
    %v608 = vsel %vm477, %v72, 0
    %v611 = vsel %vm477, %v73, 0
    %v614 = vsel %vm477, %v74, 0
    %v617 = vsel %vm477, %v75, 0
    %v620 = vsel %vm477, %v76, 0
    %v623 = vsel %vm477, %v77, 0
    %v626 = vsel %vm477, %v78, 0
    %v629 = vsel %vm477, %v79, 0
    %v632 = vsel %vm477, %v80, 0
    %v635 = vsel %vm477, %v81, 0
    %v638 = vsel %vm477, %v82, 0
    %v641 = vsel %vm477, %v83, 0
    %v644 = vsel %vm477, %v84, 0
    %v647 = vsel %vm477, %v85, 0
    %v650 = vsel %vm477, %v86, 0
    %v653 = vsel %vm477, %v87, 0
    %v656 = vsel %vm477, %v88, 0
    %v659 = vsel %vm477, %v89, 0
    %v662 = vsel %vm477, %v90, 0
    %v665 = vsel %vm477, %v91, 0
    %v668 = vsel %vm477, %v92, 0
    %vm670 = vcmask 1044480
    %v672 = vsel %vm670, %v28, 0
    %674 = vmatprep.subr.mxu0 0.0
    %675 = vmatpush1.msra.mxu0 0.0
    %676 = vmatprep.subr.mxu0 0.0
    %677 = vmatpush1.msra.mxu0 0.0
    %678 = vmatprep.subr.mxu0 0.0
    %679 = vmatpush1.msra.mxu0 0.0
    %680 = vmatprep.subr.mxu0 0.0
    %681 = vmatpush1.msra.mxu0 0.0
    %682 = vmatprep.subr.mxu0 0.0
    %683 = vmatpush1.msra.mxu0 0.0
    %684 = vmatprep.subr.mxu0 0.0
    %685 = vmatpush1.msra.mxu0 0.0
    %686 = vmatprep.subr.mxu0 0.0
    %687 = vmatpush1.msra.mxu0 0.0
    %688 = vmatprep.subr.mxu0 0.0
    %689 = vmatpush1.msra.mxu0 0.0
    %690 = vmatprep.subr.mxu0 0.0
    %691 = vmatpush1.msra.mxu0 0.0
    %692 = vmatprep.subr.mxu0 0.0
    %693 = vmatpush1.msra.mxu0 0.0
    %694 = vmatprep.subr.mxu0 0.0
    %695 = vmatpush1.msra.mxu0 0.0
    %696 = vmatprep.subr.mxu0 0.0
    %697 = vmatpush1.msra.mxu0 0.0
    %698 = vmatprep.subr.mxu0 0.0
    %699 = vmatpush1.msra.mxu0 0.0
    %700 = vmatprep.subr.mxu0 0.0
    %701 = vmatpush1.msra.mxu0 0.0
    %702 = vmatprep.subr.mxu0 0.0
    %703 = vmatpush1.msra.mxu0 0.0
    %704 = vmatprep.subr.mxu0 0.0
    %705 = vmatpush1.msra.mxu0 %v672
    %706 = vmatprep.subr.mxu0 0.0
    %707 = vmatpush2.msra.mxu0 0.0
    %708 = vmatprep.subr.mxu0 0.0
    %709 = vmatpush2.msra.mxu0 0.0
    %710 = vmatprep.subr.mxu0 0.0
    %711 = vmatpush2.msra.mxu0 0.0
    %712 = vmatprep.subr.mxu0 0.0
    %713 = vmatpush2.msra.mxu0 0.0
    %714 = vmatprep.subr.mxu0 0.0
    %715 = vmatpush2.msra.mxu0 0.0
    %716 = vmatprep.subr.mxu0 0.0
    %717 = vmatpush2.msra.mxu0 0.0
    %718 = vmatprep.subr.mxu0 0.0
    %719 = vmatpush2.msra.mxu0 0.0
    %720 = vmatprep.subr.mxu0 0.0
    %721 = vmatpush2.msra.mxu0 0.0
    %722 = vmatprep.subr.mxu0 0.0
    %723 = vmatpush2.msra.mxu0 0.0
    %724 = vmatprep.subr.mxu0 0.0
    %725 = vmatpush2.msra.mxu0 0.0
    %726 = vmatprep.subr.mxu0 0.0
    %727 = vmatpush2.msra.mxu0 0.0
    %728 = vmatprep.subr.mxu0 0.0
    %729 = vmatpush2.msra.mxu0 0.0
    %730 = vmatprep.subr.mxu0 0.0
    %731 = vmatpush2.msra.mxu0 0.0
    %732 = vmatprep.subr.mxu0 0.0
    %733 = vmatpush2.msra.mxu0 0.0
    %734 = vmatprep.subr.mxu0 0.0
    %735 = vmatpush2.msra.mxu0 0.0
    %736 = vmatprep.subr.mxu0 0.0
    %737 = vmatpush2.msra.mxu0 0.0
    %738 = vmatprep.mubr.f32.mxu0 0.0
    %739 = vmatmul.mubr.f32.gmra.mxu0 %v479
    %v740 = vpop.f32.mrf.mxu0
    %v741 = vadd.f32 %v160, %v740
    %v742 = vpop.f32.mrf.mxu0
    %743 = vmatprep.mubr.f32.mxu0 0.0
    %744 = vmatmul.mubr.f32.gmra.mxu0 %v482
    %v745 = vpop.f32.mrf.mxu0
    %v746 = vadd.f32 %v165, %v745
    %v747 = vpop.f32.mrf.mxu0
    %748 = vmatprep.mubr.f32.mxu0 0.0
    %749 = vmatmul.mubr.f32.gmra.mxu0 %v485
    %v750 = vpop.f32.mrf.mxu0
    %v751 = vadd.f32 %v170, %v750
    %v752 = vpop.f32.mrf.mxu0
    %753 = vmatprep.mubr.f32.mxu0 0.0
    %754 = vmatmul.mubr.f32.gmra.mxu0 %v488
    %v755 = vpop.f32.mrf.mxu0
    %v756 = vadd.f32 %v175, %v755
    %v757 = vpop.f32.mrf.mxu0
    %758 = vmatprep.mubr.f32.mxu0 0.0
    %759 = vmatmul.mubr.f32.gmra.mxu0 %v491
    %v760 = vpop.f32.mrf.mxu0
    %v761 = vadd.f32 %v180, %v760
    %v762 = vpop.f32.mrf.mxu0
    %763 = vmatprep.mubr.f32.mxu0 0.0
    %764 = vmatmul.mubr.f32.gmra.mxu0 %v494
    %v765 = vpop.f32.mrf.mxu0
    %v766 = vadd.f32 %v185, %v765
    %v767 = vpop.f32.mrf.mxu0
    %768 = vmatprep.mubr.f32.mxu0 0.0
    %769 = vmatmul.mubr.f32.gmra.mxu0 %v497
    %v770 = vpop.f32.mrf.mxu0
    %v771 = vadd.f32 %v190, %v770
    %v772 = vpop.f32.mrf.mxu0
    %773 = vmatprep.mubr.f32.mxu0 0.0
    %774 = vmatmul.mubr.f32.gmra.mxu0 %v500
    %v775 = vpop.f32.mrf.mxu0
    %v776 = vadd.f32 %v195, %v775
    %v777 = vpop.f32.mrf.mxu0
    %778 = vmatprep.mubr.f32.mxu0 0.0
    %779 = vmatmul.mubr.f32.gmra.mxu0 %v503
    %v780 = vpop.f32.mrf.mxu0
    %v781 = vadd.f32 %v200, %v780
    %v782 = vpop.f32.mrf.mxu0
    %783 = vmatprep.mubr.f32.mxu0 0.0
    %784 = vmatmul.mubr.f32.gmra.mxu0 %v506
    %v785 = vpop.f32.mrf.mxu0
    %v786 = vadd.f32 %v205, %v785
    %v787 = vpop.f32.mrf.mxu0
    %788 = vmatprep.mubr.f32.mxu0 0.0
    %789 = vmatmul.mubr.f32.gmra.mxu0 %v509
    %v790 = vpop.f32.mrf.mxu0
    %v791 = vadd.f32 %v210, %v790
    %v792 = vpop.f32.mrf.mxu0
    %793 = vmatprep.mubr.f32.mxu0 0.0
    %794 = vmatmul.mubr.f32.gmra.mxu0 %v512
    %v795 = vpop.f32.mrf.mxu0
    %v796 = vadd.f32 %v215, %v795
    %v797 = vpop.f32.mrf.mxu0
    %798 = vmatprep.mubr.f32.mxu0 0.0
    %799 = vmatmul.mubr.f32.gmra.mxu0 %v515
    %v800 = vpop.f32.mrf.mxu0
    %v801 = vadd.f32 %v220, %v800
    %v802 = vpop.f32.mrf.mxu0
    %803 = vmatprep.mubr.f32.mxu0 0.0
    %804 = vmatmul.mubr.f32.gmra.mxu0 %v518
    %v805 = vpop.f32.mrf.mxu0
    %v806 = vadd.f32 %v225, %v805
    %v807 = vpop.f32.mrf.mxu0
    %808 = vmatprep.mubr.f32.mxu0 0.0
    %809 = vmatmul.mubr.f32.gmra.mxu0 %v521
    %v810 = vpop.f32.mrf.mxu0
    %v811 = vadd.f32 %v230, %v810
    %v812 = vpop.f32.mrf.mxu0
    %813 = vmatprep.mubr.f32.mxu0 0.0
    %814 = vmatmul.mubr.f32.gmra.mxu0 %v524
    %v815 = vpop.f32.mrf.mxu0
    %v816 = vadd.f32 %v235, %v815
    %v817 = vpop.f32.mrf.mxu0
    %818 = vmatprep.mubr.f32.mxu0 0.0
    %819 = vmatmul.mubr.f32.gmra.mxu0 %v527
    %v820 = vpop.f32.mrf.mxu0
    %v821 = vadd.f32 %v240, %v820
    %v822 = vpop.f32.mrf.mxu0
    %823 = vmatprep.mubr.f32.mxu0 0.0
    %824 = vmatmul.mubr.f32.gmra.mxu0 %v530
    %v825 = vpop.f32.mrf.mxu0
    %v826 = vadd.f32 %v245, %v825
    %v827 = vpop.f32.mrf.mxu0
    %828 = vmatprep.mubr.f32.mxu0 0.0
    %829 = vmatmul.mubr.f32.gmra.mxu0 %v533
    %v830 = vpop.f32.mrf.mxu0
    %v831 = vadd.f32 %v250, %v830
    %v832 = vpop.f32.mrf.mxu0
    %833 = vmatprep.mubr.f32.mxu0 0.0
    %834 = vmatmul.mubr.f32.gmra.mxu0 %v536
    %v835 = vpop.f32.mrf.mxu0
    %v836 = vadd.f32 %v255, %v835
    %v837 = vpop.f32.mrf.mxu0
    %838 = vmatprep.mubr.f32.mxu0 0.0
    %839 = vmatmul.mubr.f32.gmra.mxu0 %v539
    %v840 = vpop.f32.mrf.mxu0
    %v841 = vadd.f32 %v260, %v840
    %v842 = vpop.f32.mrf.mxu0
    %843 = vmatprep.mubr.f32.mxu0 0.0
    %844 = vmatmul.mubr.f32.gmra.mxu0 %v542
    %v845 = vpop.f32.mrf.mxu0
    %v846 = vadd.f32 %v265, %v845
    %v847 = vpop.f32.mrf.mxu0
    %848 = vmatprep.mubr.f32.mxu0 0.0
    %849 = vmatmul.mubr.f32.gmra.mxu0 %v545
    %v850 = vpop.f32.mrf.mxu0
    %v851 = vadd.f32 %v270, %v850
    %v852 = vpop.f32.mrf.mxu0
    %853 = vmatprep.mubr.f32.mxu0 0.0
    %854 = vmatmul.mubr.f32.gmra.mxu0 %v548
    %v855 = vpop.f32.mrf.mxu0
    %v856 = vadd.f32 %v275, %v855
    %v857 = vpop.f32.mrf.mxu0
    %858 = vmatprep.mubr.f32.mxu0 0.0
    %859 = vmatmul.mubr.f32.gmra.mxu0 %v551
    %v860 = vpop.f32.mrf.mxu0
    %v861 = vadd.f32 %v280, %v860
    %v862 = vpop.f32.mrf.mxu0
    %863 = vmatprep.mubr.f32.mxu0 0.0
    %864 = vmatmul.mubr.f32.gmra.mxu0 %v554
    %v865 = vpop.f32.mrf.mxu0
    %v866 = vadd.f32 %v285, %v865
    %v867 = vpop.f32.mrf.mxu0
    %868 = vmatprep.mubr.f32.mxu0 0.0
    %869 = vmatmul.mubr.f32.gmra.mxu0 %v557
    %v870 = vpop.f32.mrf.mxu0
    %v871 = vadd.f32 %v290, %v870
    %v872 = vpop.f32.mrf.mxu0
    %873 = vmatprep.mubr.f32.mxu0 0.0
    %874 = vmatmul.mubr.f32.gmra.mxu0 %v560
    %v875 = vpop.f32.mrf.mxu0
    %v876 = vadd.f32 %v295, %v875
    %v877 = vpop.f32.mrf.mxu0
    %878 = vmatprep.mubr.f32.mxu0 0.0
    %879 = vmatmul.mubr.f32.gmra.mxu0 %v563
    %v880 = vpop.f32.mrf.mxu0
    %v881 = vadd.f32 %v300, %v880
    %v882 = vpop.f32.mrf.mxu0
    %883 = vmatprep.mubr.f32.mxu0 0.0
    %884 = vmatmul.mubr.f32.gmra.mxu0 %v566
    %v885 = vpop.f32.mrf.mxu0
    %v886 = vadd.f32 %v305, %v885
    %v887 = vpop.f32.mrf.mxu0
    %888 = vmatprep.mubr.f32.mxu0 0.0
    %889 = vmatmul.mubr.f32.gmra.mxu0 %v569
    %v890 = vpop.f32.mrf.mxu0
    %v891 = vadd.f32 %v310, %v890
    %v892 = vpop.f32.mrf.mxu0
    %893 = vmatprep.mubr.f32.mxu0 0.0
    %894 = vmatmul.mubr.f32.gmra.mxu0 %v572
    %v895 = vpop.f32.mrf.mxu0
    %v896 = vadd.f32 %v315, %v895
    %v897 = vpop.f32.mrf.mxu0
    %898 = vmatprep.mubr.f32.mxu0 0.0
    %899 = vmatmul.mubr.f32.gmra.mxu0 %v575
    %v900 = vpop.f32.mrf.mxu0
    %v901 = vadd.f32 %v320, %v900
    %v902 = vpop.f32.mrf.mxu0
    %903 = vmatprep.mubr.f32.mxu0 0.0
    %904 = vmatmul.mubr.f32.gmra.mxu0 %v578
    %v905 = vpop.f32.mrf.mxu0
    %v906 = vadd.f32 %v325, %v905
    %v907 = vpop.f32.mrf.mxu0
    %908 = vmatprep.mubr.f32.mxu0 0.0
    %909 = vmatmul.mubr.f32.gmra.mxu0 %v581
    %v910 = vpop.f32.mrf.mxu0
    %v911 = vadd.f32 %v330, %v910
    %v912 = vpop.f32.mrf.mxu0
    %913 = vmatprep.mubr.f32.mxu0 0.0
    %914 = vmatmul.mubr.f32.gmra.mxu0 %v584
    %v915 = vpop.f32.mrf.mxu0
    %v916 = vadd.f32 %v335, %v915
    %v917 = vpop.f32.mrf.mxu0
    %918 = vmatprep.mubr.f32.mxu0 0.0
    %919 = vmatmul.mubr.f32.gmra.mxu0 %v587
    %v920 = vpop.f32.mrf.mxu0
    %v921 = vadd.f32 %v340, %v920
    %v922 = vpop.f32.mrf.mxu0
    %923 = vmatprep.mubr.f32.mxu0 0.0
    %924 = vmatmul.mubr.f32.gmra.mxu0 %v590
    %v925 = vpop.f32.mrf.mxu0
    %v926 = vadd.f32 %v345, %v925
    %v927 = vpop.f32.mrf.mxu0
    %928 = vmatprep.mubr.f32.mxu0 0.0
    %929 = vmatmul.mubr.f32.gmra.mxu0 %v593
    %v930 = vpop.f32.mrf.mxu0
    %v931 = vadd.f32 %v350, %v930
    %v932 = vpop.f32.mrf.mxu0
    %933 = vmatprep.mubr.f32.mxu0 0.0
    %934 = vmatmul.mubr.f32.gmra.mxu0 %v596
    %v935 = vpop.f32.mrf.mxu0
    %v936 = vadd.f32 %v355, %v935
    %v937 = vpop.f32.mrf.mxu0
    %938 = vmatprep.mubr.f32.mxu0 0.0
    %939 = vmatmul.mubr.f32.gmra.mxu0 %v599
    %v940 = vpop.f32.mrf.mxu0
    %v941 = vadd.f32 %v360, %v940
    %v942 = vpop.f32.mrf.mxu0
    %943 = vmatprep.mubr.f32.mxu0 0.0
    %944 = vmatmul.mubr.f32.gmra.mxu0 %v602
    %v945 = vpop.f32.mrf.mxu0
    %v946 = vadd.f32 %v365, %v945
    %v947 = vpop.f32.mrf.mxu0
    %948 = vmatprep.mubr.f32.mxu0 0.0
    %949 = vmatmul.mubr.f32.gmra.mxu0 %v605
    %v950 = vpop.f32.mrf.mxu0
    %v951 = vadd.f32 %v370, %v950
    %v952 = vpop.f32.mrf.mxu0
    %953 = vmatprep.mubr.f32.mxu0 0.0
    %954 = vmatmul.mubr.f32.gmra.mxu0 %v608
    %v955 = vpop.f32.mrf.mxu0
    %v956 = vadd.f32 %v375, %v955
    %v957 = vpop.f32.mrf.mxu0
    %958 = vmatprep.mubr.f32.mxu0 0.0
    %959 = vmatmul.mubr.f32.gmra.mxu0 %v611
    %v960 = vpop.f32.mrf.mxu0
    %v961 = vadd.f32 %v380, %v960
    %v962 = vpop.f32.mrf.mxu0
    %963 = vmatprep.mubr.f32.mxu0 0.0
    %964 = vmatmul.mubr.f32.gmra.mxu0 %v614
    %v965 = vpop.f32.mrf.mxu0
    %v966 = vadd.f32 %v385, %v965
    %v967 = vpop.f32.mrf.mxu0
    %968 = vmatprep.mubr.f32.mxu0 0.0
    %969 = vmatmul.mubr.f32.gmra.mxu0 %v617
    %v970 = vpop.f32.mrf.mxu0
    %v971 = vadd.f32 %v390, %v970
    %v972 = vpop.f32.mrf.mxu0
    %973 = vmatprep.mubr.f32.mxu0 0.0
    %974 = vmatmul.mubr.f32.gmra.mxu0 %v620
    %v975 = vpop.f32.mrf.mxu0
    %v976 = vadd.f32 %v395, %v975
    %v977 = vpop.f32.mrf.mxu0
    %978 = vmatprep.mubr.f32.mxu0 0.0
    %979 = vmatmul.mubr.f32.gmra.mxu0 %v623
    %v980 = vpop.f32.mrf.mxu0
    %v981 = vadd.f32 %v400, %v980
    %v982 = vpop.f32.mrf.mxu0
    %983 = vmatprep.mubr.f32.mxu0 0.0
    %984 = vmatmul.mubr.f32.gmra.mxu0 %v626
    %v985 = vpop.f32.mrf.mxu0
    %v986 = vadd.f32 %v405, %v985
    %v987 = vpop.f32.mrf.mxu0
    %988 = vmatprep.mubr.f32.mxu0 0.0
    %989 = vmatmul.mubr.f32.gmra.mxu0 %v629
    %v990 = vpop.f32.mrf.mxu0
    %v991 = vadd.f32 %v410, %v990
    %v992 = vpop.f32.mrf.mxu0
    %993 = vmatprep.mubr.f32.mxu0 0.0
    %994 = vmatmul.mubr.f32.gmra.mxu0 %v632
    %v995 = vpop.f32.mrf.mxu0
    %v996 = vadd.f32 %v415, %v995
    %v997 = vpop.f32.mrf.mxu0
    %998 = vmatprep.mubr.f32.mxu0 0.0
    %999 = vmatmul.mubr.f32.gmra.mxu0 %v635
    %v1000 = vpop.f32.mrf.mxu0
    %v1001 = vadd.f32 %v420, %v1000
    %v1002 = vpop.f32.mrf.mxu0
    %1003 = vmatprep.mubr.f32.mxu0 0.0
    %1004 = vmatmul.mubr.f32.gmra.mxu0 %v638
    %v1005 = vpop.f32.mrf.mxu0
    %v1006 = vadd.f32 %v425, %v1005
    %v1007 = vpop.f32.mrf.mxu0
    %1008 = vmatprep.mubr.f32.mxu0 0.0
    %1009 = vmatmul.mubr.f32.gmra.mxu0 %v641
    %v1010 = vpop.f32.mrf.mxu0
    %v1011 = vadd.f32 %v430, %v1010
    %v1012 = vpop.f32.mrf.mxu0
    %1013 = vmatprep.mubr.f32.mxu0 0.0
    %1014 = vmatmul.mubr.f32.gmra.mxu0 %v644
    %v1015 = vpop.f32.mrf.mxu0
    %v1016 = vadd.f32 %v435, %v1015
    %v1017 = vpop.f32.mrf.mxu0
    %1018 = vmatprep.mubr.f32.mxu0 0.0
    %1019 = vmatmul.mubr.f32.gmra.mxu0 %v647
    %v1020 = vpop.f32.mrf.mxu0
    %v1021 = vadd.f32 %v440, %v1020
    %v1022 = vpop.f32.mrf.mxu0
    %1023 = vmatprep.mubr.f32.mxu0 0.0
    %1024 = vmatmul.mubr.f32.gmra.mxu0 %v650
    %v1025 = vpop.f32.mrf.mxu0
    %v1026 = vadd.f32 %v445, %v1025
    %v1027 = vpop.f32.mrf.mxu0
    %1028 = vmatprep.mubr.f32.mxu0 0.0
    %1029 = vmatmul.mubr.f32.gmra.mxu0 %v653
    %v1030 = vpop.f32.mrf.mxu0
    %v1031 = vadd.f32 %v450, %v1030
    %v1032 = vpop.f32.mrf.mxu0
    %1033 = vmatprep.mubr.f32.mxu0 0.0
    %1034 = vmatmul.mubr.f32.gmra.mxu0 %v656
    %v1035 = vpop.f32.mrf.mxu0
    %v1036 = vadd.f32 %v455, %v1035
    %v1037 = vpop.f32.mrf.mxu0
    %1038 = vmatprep.mubr.f32.mxu0 0.0
    %1039 = vmatmul.mubr.f32.gmra.mxu0 %v659
    %v1040 = vpop.f32.mrf.mxu0
    %v1041 = vadd.f32 %v460, %v1040
    %v1042 = vpop.f32.mrf.mxu0
    %1043 = vmatprep.mubr.f32.mxu0 0.0
    %1044 = vmatmul.mubr.f32.gmra.mxu0 %v662
    %v1045 = vpop.f32.mrf.mxu0
    %v1046 = vadd.f32 %v465, %v1045
    %v1047 = vpop.f32.mrf.mxu0
    %1048 = vmatprep.mubr.f32.mxu0 0.0
    %1049 = vmatmul.mubr.f32.gmra.mxu0 %v665
    %v1050 = vpop.f32.mrf.mxu0
    %v1051 = vadd.f32 %v470, %v1050
    %v1052 = vpop.f32.mrf.mxu0
    %1053 = vmatprep.mubr.f32.mxu0 0.0
    %1054 = vmatmul.mubr.f32.gmra.mxu0 %v668
    %v1055 = vpop.f32.mrf.mxu0
    %v1056 = vadd.f32 %v475, %v1055
    %v1057 = vpop.f32.mrf.mxu0
    %1058 = vdwg.mxu0
    %v1059 = vmax.f32 %v741, 0.0
    %v1060 = vmax.f32 %v746, 0.0
    %v1061 = vmax.f32 %v751, 0.0
    %v1062 = vmax.f32 %v756, 0.0
    %v1063 = vmax.f32 %v761, 0.0
    %v1064 = vmax.f32 %v766, 0.0
    %v1065 = vmax.f32 %v771, 0.0
    %v1066 = vmax.f32 %v776, 0.0
    %v1067 = vmax.f32 %v781, 0.0
    %v1068 = vmax.f32 %v786, 0.0
    %v1069 = vmax.f32 %v791, 0.0
    %v1070 = vmax.f32 %v796, 0.0
    %v1071 = vmax.f32 %v801, 0.0
    %v1072 = vmax.f32 %v806, 0.0
    %v1073 = vmax.f32 %v811, 0.0
    %v1074 = vmax.f32 %v816, 0.0
    %v1075 = vmax.f32 %v821, 0.0
    %v1076 = vmax.f32 %v826, 0.0
    %v1077 = vmax.f32 %v831, 0.0
    %v1078 = vmax.f32 %v836, 0.0
    %v1079 = vmax.f32 %v841, 0.0
    %v1080 = vmax.f32 %v846, 0.0
    %v1081 = vmax.f32 %v851, 0.0
    %v1082 = vmax.f32 %v856, 0.0
    %v1083 = vmax.f32 %v861, 0.0
    %v1084 = vmax.f32 %v866, 0.0
    %v1085 = vmax.f32 %v871, 0.0
    %v1086 = vmax.f32 %v876, 0.0
    %v1087 = vmax.f32 %v881, 0.0
    %v1088 = vmax.f32 %v886, 0.0
    %v1089 = vmax.f32 %v891, 0.0
    %v1090 = vmax.f32 %v896, 0.0
    %v1091 = vmax.f32 %v901, 0.0
    %v1092 = vmax.f32 %v906, 0.0
    %v1093 = vmax.f32 %v911, 0.0
    %v1094 = vmax.f32 %v916, 0.0
    %v1095 = vmax.f32 %v921, 0.0
    %v1096 = vmax.f32 %v926, 0.0
    %v1097 = vmax.f32 %v931, 0.0
    %v1098 = vmax.f32 %v936, 0.0
    %v1099 = vmax.f32 %v941, 0.0
    %v1100 = vmax.f32 %v946, 0.0
    %v1101 = vmax.f32 %v951, 0.0
    %v1102 = vmax.f32 %v956, 0.0
    %v1103 = vmax.f32 %v961, 0.0
    %v1104 = vmax.f32 %v966, 0.0
    %v1105 = vmax.f32 %v971, 0.0
    %v1106 = vmax.f32 %v976, 0.0
    %v1107 = vmax.f32 %v981, 0.0
    %v1108 = vmax.f32 %v986, 0.0
    %v1109 = vmax.f32 %v991, 0.0
    %v1110 = vmax.f32 %v996, 0.0
    %v1111 = vmax.f32 %v1001, 0.0
    %v1112 = vmax.f32 %v1006, 0.0
    %v1113 = vmax.f32 %v1011, 0.0
    %v1114 = vmax.f32 %v1016, 0.0
    %v1115 = vmax.f32 %v1021, 0.0
    %v1116 = vmax.f32 %v1026, 0.0
    %v1117 = vmax.f32 %v1031, 0.0
    %v1118 = vmax.f32 %v1036, 0.0
    %v1119 = vmax.f32 %v1041, 0.0
    %v1120 = vmax.f32 %v1046, 0.0
    %v1121 = vmax.f32 %v1051, 0.0
    %v1122 = vmax.f32 %v1056, 0.0
    %v1123 = vld [vmem:[%s3] sm:$0xff]
    %v1124 = vld [vmem:[%s3 + $0x8] sm:$0xff]
    %v1125 = vld [vmem:[%s3 + $0x10] sm:$0xff]
    %v1126 = vld [vmem:[%s3 + $0x18] sm:$0xff]
    %v1127 = vld [vmem:[%s3 + $0x20] sm:$0xff]
    %v1128 = vld [vmem:[%s3 + $0x28] sm:$0xff]
    %v1129 = vld [vmem:[%s3 + $0x30] sm:$0xff]
    %v1130 = vld [vmem:[%s3 + $0x38] sm:$0xff]
    %v1131 = vld [vmem:[%s3 + $0x40] sm:$0xff]
    %v1132 = vld [vmem:[%s3 + $0x48] sm:$0xff]
    %v1133 = vld [vmem:[%s3 + $0x50] sm:$0xff]
    %v1134 = vld [vmem:[%s3 + $0x58] sm:$0xff]
    %v1135 = vld [vmem:[%s3 + $0x60] sm:$0xff]
    %v1136 = vld [vmem:[%s3 + $0x68] sm:$0xff]
    %v1137 = vld [vmem:[%s3 + $0x70] sm:$0xff]
    %v1138 = vld [vmem:[%s3 + $0x78] sm:$0xff]
    %v1139 = vld [vmem:[%s3 + $0x80] sm:$0xff]
    %v1140 = vld [vmem:[%s3 + $0x88] sm:$0xff]
    %v1141 = vld [vmem:[%s3 + $0x90] sm:$0xff]
    %v1142 = vld [vmem:[%s3 + $0x98] sm:$0xff]
    %v1143 = vld [vmem:[%s3 + $0xa0] sm:$0xff]
    %v1144 = vld [vmem:[%s3 + $0xa8] sm:$0xff]
    %v1145 = vld [vmem:[%s3 + $0xb0] sm:$0xff]
    %v1146 = vld [vmem:[%s3 + $0xb8] sm:$0xff]
    %v1147 = vld [vmem:[%s3 + $0xc0] sm:$0xff]
    %v1148 = vld [vmem:[%s3 + $0xc8] sm:$0xff]
    %v1149 = vld [vmem:[%s3 + $0xd0] sm:$0xff]
    %v1150 = vld [vmem:[%s3 + $0xd8] sm:$0xff]
    %v1151 = vld [vmem:[%s3 + $0xe0] sm:$0xff]
    %v1152 = vld [vmem:[%s3 + $0xe8] sm:$0xff]
    %v1153 = vld [vmem:[%s3 + $0xf0] sm:$0xff]
    %v1154 = vld [vmem:[%s3 + $0xf8] sm:$0xff]
    %v1155 = vpack.c.bf16 %v1060, %v1059
    %v1156 = vpack.c.bf16 %v1062, %v1061
    %v1157 = vpack.c.bf16 %v1064, %v1063
    %v1158 = vpack.c.bf16 %v1066, %v1065
    %v1159 = vpack.c.bf16 %v1068, %v1067
    %v1160 = vpack.c.bf16 %v1070, %v1069
    %v1161 = vpack.c.bf16 %v1072, %v1071
    %v1162 = vpack.c.bf16 %v1074, %v1073
    %v1163 = vpack.c.bf16 %v1076, %v1075
    %v1164 = vpack.c.bf16 %v1078, %v1077
    %v1165 = vpack.c.bf16 %v1080, %v1079
    %v1166 = vpack.c.bf16 %v1082, %v1081
    %v1167 = vpack.c.bf16 %v1084, %v1083
    %v1168 = vpack.c.bf16 %v1086, %v1085
    %v1169 = vpack.c.bf16 %v1088, %v1087
    %v1170 = vpack.c.bf16 %v1090, %v1089
    %v1171 = vpack.c.bf16 %v1092, %v1091
    %v1172 = vpack.c.bf16 %v1094, %v1093
    %v1173 = vpack.c.bf16 %v1096, %v1095
    %v1174 = vpack.c.bf16 %v1098, %v1097
    %v1175 = vpack.c.bf16 %v1100, %v1099
    %v1176 = vpack.c.bf16 %v1102, %v1101
    %v1177 = vpack.c.bf16 %v1104, %v1103
    %v1178 = vpack.c.bf16 %v1106, %v1105
    %v1179 = vpack.c.bf16 %v1108, %v1107
    %v1180 = vpack.c.bf16 %v1110, %v1109
    %v1181 = vpack.c.bf16 %v1112, %v1111
    %v1182 = vpack.c.bf16 %v1114, %v1113
    %v1183 = vpack.c.bf16 %v1116, %v1115
    %v1184 = vpack.c.bf16 %v1118, %v1117
    %v1185 = vpack.c.bf16 %v1120, %v1119
    %v1186 = vpack.c.bf16 %v1122, %v1121
    %v1187 = vld [vmem:[%s4] sm:$0xff]
    %v1188 = vld [vmem:[%s4 + $0x8] sm:$0xff]
    %v1189 = vld [vmem:[%s4 + $0x10] sm:$0xff]
    %v1190 = vld [vmem:[%s4 + $0x18] sm:$0xff]
    %v1191 = vld [vmem:[%s4 + $0x20] sm:$0xff]
    %v1192 = vld [vmem:[%s4 + $0x28] sm:$0xff]
    %v1193 = vld [vmem:[%s4 + $0x30] sm:$0xff]
    %v1194 = vld [vmem:[%s4 + $0x38] sm:$0xff]
    %v1195 = vld [vmem:[%s4 + $0x40] sm:$0xff]
    %v1196 = vld [vmem:[%s4 + $0x48] sm:$0xff]
    %v1197 = vld [vmem:[%s4 + $0x50] sm:$0xff]
    %v1198 = vld [vmem:[%s4 + $0x58] sm:$0xff]
    %v1199 = vld [vmem:[%s4 + $0x60] sm:$0xff]
    %v1200 = vld [vmem:[%s4 + $0x68] sm:$0xff]
    %v1201 = vld [vmem:[%s4 + $0x70] sm:$0xff]
    %v1202 = vld [vmem:[%s4 + $0x78] sm:$0xff]
    %1204 = vset.pattern.permute.xlu0 0
    %1205 = vperm.xlu0 %1204, %v1187
    %v1206 = vpop.permute.xlu0 %1205
    %1209 = vset.pattern.permute.xlu0 0
    %1210 = vperm.xlu0 %1209, %v1188
    %v1211 = vpop.permute.xlu0 %1210
    %1214 = vset.pattern.permute.xlu0 0
    %1215 = vperm.xlu0 %1214, %v1189
    %v1216 = vpop.permute.xlu0 %1215
    %1219 = vset.pattern.permute.xlu0 0
    %1220 = vperm.xlu0 %1219, %v1190
    %v1221 = vpop.permute.xlu0 %1220
    %1224 = vset.pattern.permute.xlu0 0
    %1225 = vperm.xlu0 %1224, %v1191
    %v1226 = vpop.permute.xlu0 %1225
    %1229 = vset.pattern.permute.xlu0 0
    %1230 = vperm.xlu0 %1229, %v1192
    %v1231 = vpop.permute.xlu0 %1230
    %1234 = vset.pattern.permute.xlu0 0
    %1235 = vperm.xlu0 %1234, %v1193
    %v1236 = vpop.permute.xlu0 %1235
    %1239 = vset.pattern.permute.xlu0 0
    %1240 = vperm.xlu0 %1239, %v1194
    %v1241 = vpop.permute.xlu0 %1240
    %1244 = vset.pattern.permute.xlu0 0
    %1245 = vperm.xlu0 %1244, %v1195
    %v1246 = vpop.permute.xlu0 %1245
    %1249 = vset.pattern.permute.xlu0 0
    %1250 = vperm.xlu0 %1249, %v1196
    %v1251 = vpop.permute.xlu0 %1250
    %1254 = vset.pattern.permute.xlu0 0
    %1255 = vperm.xlu0 %1254, %v1197
    %v1256 = vpop.permute.xlu0 %1255
    %1259 = vset.pattern.permute.xlu0 0
    %1260 = vperm.xlu0 %1259, %v1198
    %v1261 = vpop.permute.xlu0 %1260
    %1264 = vset.pattern.permute.xlu0 0
    %1265 = vperm.xlu0 %1264, %v1199
    %v1266 = vpop.permute.xlu0 %1265
    %1269 = vset.pattern.permute.xlu0 0
    %1270 = vperm.xlu0 %1269, %v1200
    %v1271 = vpop.permute.xlu0 %1270
    %1274 = vset.pattern.permute.xlu0 0
    %1275 = vperm.xlu0 %1274, %v1201
    %v1276 = vpop.permute.xlu0 %1275
    %1279 = vset.pattern.permute.xlu0 0
    %1280 = vperm.xlu0 %1279, %v1202
    %v1281 = vpop.permute.xlu0 %1280
    %v1315 = vunpack.c.l.b16 %v1123
    %v1316 = vunpack.c.h.b16 %v1123
    %v1317 = vunpack.c.l.b16 %v1124
    %v1318 = vunpack.c.h.b16 %v1124
    %v1319 = vunpack.c.l.b16 %v1125
    %v1320 = vunpack.c.h.b16 %v1125
    %v1321 = vunpack.c.l.b16 %v1126
    %v1322 = vunpack.c.h.b16 %v1126
    %v1323 = vunpack.c.l.b16 %v1127
    %v1324 = vunpack.c.h.b16 %v1127
    %v1325 = vunpack.c.l.b16 %v1128
    %v1326 = vunpack.c.h.b16 %v1128
    %v1327 = vunpack.c.l.b16 %v1129
    %v1328 = vunpack.c.h.b16 %v1129
    %v1329 = vunpack.c.l.b16 %v1130
    %v1330 = vunpack.c.h.b16 %v1130
    %v1331 = vunpack.c.l.b16 %v1131
    %v1332 = vunpack.c.h.b16 %v1131
    %v1333 = vunpack.c.l.b16 %v1132
    %v1334 = vunpack.c.h.b16 %v1132
    %v1335 = vunpack.c.l.b16 %v1133
    %v1336 = vunpack.c.h.b16 %v1133
    %v1337 = vunpack.c.l.b16 %v1134
    %v1338 = vunpack.c.h.b16 %v1134
    %v1339 = vunpack.c.l.b16 %v1135
    %v1340 = vunpack.c.h.b16 %v1135
    %v1341 = vunpack.c.l.b16 %v1136
    %v1342 = vunpack.c.h.b16 %v1136
    %v1343 = vunpack.c.l.b16 %v1137
    %v1344 = vunpack.c.h.b16 %v1137
    %v1345 = vunpack.c.l.b16 %v1138
    %v1346 = vunpack.c.h.b16 %v1138
    %v1347 = vunpack.c.l.b16 %v1139
    %v1348 = vunpack.c.h.b16 %v1139
    %v1349 = vunpack.c.l.b16 %v1140
    %v1350 = vunpack.c.h.b16 %v1140
    %v1351 = vunpack.c.l.b16 %v1141
    %v1352 = vunpack.c.h.b16 %v1141
    %v1353 = vunpack.c.l.b16 %v1142
    %v1354 = vunpack.c.h.b16 %v1142
    %v1355 = vunpack.c.l.b16 %v1143
    %v1356 = vunpack.c.h.b16 %v1143
    %v1357 = vunpack.c.l.b16 %v1144
    %v1358 = vunpack.c.h.b16 %v1144
    %v1359 = vunpack.c.l.b16 %v1145
    %v1360 = vunpack.c.h.b16 %v1145
    %v1361 = vunpack.c.l.b16 %v1146
    %v1362 = vunpack.c.h.b16 %v1146
    %v1363 = vunpack.c.l.b16 %v1147
    %v1364 = vunpack.c.h.b16 %v1147
    %v1365 = vunpack.c.l.b16 %v1148
    %v1366 = vunpack.c.h.b16 %v1148
    %v1367 = vunpack.c.l.b16 %v1149
    %v1368 = vunpack.c.h.b16 %v1149
    %v1369 = vunpack.c.l.b16 %v1150
    %v1370 = vunpack.c.h.b16 %v1150
    %v1371 = vunpack.c.l.b16 %v1151
    %v1372 = vunpack.c.h.b16 %v1151
    %v1373 = vunpack.c.l.b16 %v1152
    %v1374 = vunpack.c.h.b16 %v1152
    %v1375 = vunpack.c.l.b16 %v1153
    %v1376 = vunpack.c.h.b16 %v1153
    %v1377 = vunpack.c.l.b16 %v1154
    %v1378 = vunpack.c.h.b16 %v1154
    %v1379 = vpack.c.b16 %v1319, %v1315
    %v1380 = vpack.c.b16 %v1320, %v1316
    %v1381 = vpack.c.b16 %v1321, %v1317
    %v1382 = vpack.c.b16 %v1322, %v1318
    %v1383 = vpack.c.b16 %v1327, %v1323
    %v1384 = vpack.c.b16 %v1328, %v1324
    %v1385 = vpack.c.b16 %v1329, %v1325
    %v1386 = vpack.c.b16 %v1330, %v1326
    %v1387 = vpack.c.b16 %v1335, %v1331
    %v1388 = vpack.c.b16 %v1336, %v1332
    %v1389 = vpack.c.b16 %v1337, %v1333
    %v1390 = vpack.c.b16 %v1338, %v1334
    %v1391 = vpack.c.b16 %v1343, %v1339
    %v1392 = vpack.c.b16 %v1344, %v1340
    %v1393 = vpack.c.b16 %v1345, %v1341
    %v1394 = vpack.c.b16 %v1346, %v1342
    %v1395 = vpack.c.b16 %v1351, %v1347
    %v1396 = vpack.c.b16 %v1352, %v1348
    %v1397 = vpack.c.b16 %v1353, %v1349
    %v1398 = vpack.c.b16 %v1354, %v1350
    %v1399 = vpack.c.b16 %v1359, %v1355
    %v1400 = vpack.c.b16 %v1360, %v1356
    %v1401 = vpack.c.b16 %v1361, %v1357
    %v1402 = vpack.c.b16 %v1362, %v1358
    %v1403 = vpack.c.b16 %v1367, %v1363
    %v1404 = vpack.c.b16 %v1368, %v1364
    %v1405 = vpack.c.b16 %v1369, %v1365
    %v1406 = vpack.c.b16 %v1370, %v1366
    %v1407 = vpack.c.b16 %v1375, %v1371
    %v1408 = vpack.c.b16 %v1376, %v1372
    %v1409 = vpack.c.b16 %v1377, %v1373
    %v1410 = vpack.c.b16 %v1378, %v1374
    %1443 = vmatprep.subr.bf16.mxu0 0
    %1444 = vmatpush1.bf16.msra.mxu0 %v1162
    %1445 = vmatprep.subr.bf16.mxu0 0
    %1446 = vmatpush1.bf16.msra.mxu0 %v1161
    %1447 = vmatprep.subr.bf16.mxu0 0
    %1448 = vmatpush1.bf16.msra.mxu0 %v1160
    %1449 = vmatprep.subr.bf16.mxu0 0
    %1450 = vmatpush1.bf16.msra.mxu0 %v1159
    %1451 = vmatprep.subr.bf16.mxu0 0
    %1452 = vmatpush1.bf16.msra.mxu0 %v1158
    %1453 = vmatprep.subr.bf16.mxu0 0
    %1454 = vmatpush1.bf16.msra.mxu0 %v1157
    %1455 = vmatprep.subr.bf16.mxu0 0
    %1456 = vmatpush1.bf16.msra.mxu0 %v1156
    %1457 = vmatprep.subr.bf16.mxu0 0
    %1458 = vmatpush1.bf16.msra.mxu0 %v1155
    %1459 = vmatprep.subr.bf16.mxu0 0
    %1460 = vmatpush2.bf16.msra.mxu0 %v1170
    %1461 = vmatprep.subr.bf16.mxu0 0
    %1462 = vmatpush2.bf16.msra.mxu0 %v1169
    %1463 = vmatprep.subr.bf16.mxu0 0
    %1464 = vmatpush2.bf16.msra.mxu0 %v1168
    %1465 = vmatprep.subr.bf16.mxu0 0
    %1466 = vmatpush2.bf16.msra.mxu0 %v1167
    %1467 = vmatprep.subr.bf16.mxu0 0
    %1468 = vmatpush2.bf16.msra.mxu0 %v1166
    %1469 = vmatprep.subr.bf16.mxu0 0
    %1470 = vmatpush2.bf16.msra.mxu0 %v1165
    %1471 = vmatprep.subr.bf16.mxu0 0
    %1472 = vmatpush2.bf16.msra.mxu0 %v1164
    %1473 = vmatprep.subr.bf16.mxu0 0
    %1474 = vmatpush2.bf16.msra.mxu0 %v1163
    %1475 = vmatprep.mubr.bf16.mxu0 %v1380
    %1476 = vmatmul.mubr.bf16.gmra.mxu0 %v1379
    %v1477 = vpop.f32.mrf.mxu0
    %v1478 = vadd.f32 %v1206, %v1477
    %v1479 = vpop.f32.mrf.mxu0
    %v1480 = vpop.f32.mrf.mxu0
    %v1481 = vadd.f32 %v1211, %v1480
    %v1482 = vpop.f32.mrf.mxu0
    %1483 = vmatprep.mubr.bf16.mxu0 %v1384
    %1484 = vmatmul.mubr.bf16.gmra.mxu0 %v1383
    %v1485 = vpop.f32.mrf.mxu0
    %v1486 = vadd.f32 %v1216, %v1485
    %v1487 = vpop.f32.mrf.mxu0
    %v1488 = vpop.f32.mrf.mxu0
    %v1489 = vadd.f32 %v1221, %v1488
    %v1490 = vpop.f32.mrf.mxu0
    %1491 = vmatprep.mubr.bf16.mxu0 %v1388
    %1492 = vmatmul.mubr.bf16.gmra.mxu0 %v1387
    %v1493 = vpop.f32.mrf.mxu0
    %v1494 = vadd.f32 %v1226, %v1493
    %v1495 = vpop.f32.mrf.mxu0
    %v1496 = vpop.f32.mrf.mxu0
    %v1497 = vadd.f32 %v1231, %v1496
    %v1498 = vpop.f32.mrf.mxu0
    %1499 = vmatprep.mubr.bf16.mxu0 %v1392
    %1500 = vmatmul.mubr.bf16.gmra.mxu0 %v1391
    %v1501 = vpop.f32.mrf.mxu0
    %v1502 = vadd.f32 %v1236, %v1501
    %v1503 = vpop.f32.mrf.mxu0
    %v1504 = vpop.f32.mrf.mxu0
    %v1505 = vadd.f32 %v1241, %v1504
    %v1506 = vpop.f32.mrf.mxu0
    %1507 = vmatprep.mubr.bf16.mxu0 %v1396
    %1508 = vmatmul.mubr.bf16.gmra.mxu0 %v1395
    %v1509 = vpop.f32.mrf.mxu0
    %v1510 = vadd.f32 %v1246, %v1509
    %v1511 = vpop.f32.mrf.mxu0
    %v1512 = vpop.f32.mrf.mxu0
    %v1513 = vadd.f32 %v1251, %v1512
    %v1514 = vpop.f32.mrf.mxu0
    %1515 = vmatprep.mubr.bf16.mxu0 %v1400
    %1516 = vmatmul.mubr.bf16.gmra.mxu0 %v1399
    %v1517 = vpop.f32.mrf.mxu0
    %v1518 = vadd.f32 %v1256, %v1517
    %v1519 = vpop.f32.mrf.mxu0
    %v1520 = vpop.f32.mrf.mxu0
    %v1521 = vadd.f32 %v1261, %v1520
    %v1522 = vpop.f32.mrf.mxu0
    %1523 = vmatprep.mubr.bf16.mxu0 %v1404
    %1524 = vmatmul.mubr.bf16.gmra.mxu0 %v1403
    %v1525 = vpop.f32.mrf.mxu0
    %v1526 = vadd.f32 %v1266, %v1525
    %v1527 = vpop.f32.mrf.mxu0
    %v1528 = vpop.f32.mrf.mxu0
    %v1529 = vadd.f32 %v1271, %v1528
    %v1530 = vpop.f32.mrf.mxu0
    %1531 = vmatprep.mubr.bf16.mxu0 %v1408
    %1532 = vmatmul.mubr.bf16.gmra.mxu0 %v1407
    %v1533 = vpop.f32.mrf.mxu0
    %v1534 = vadd.f32 %v1276, %v1533
    %v1535 = vpop.f32.mrf.mxu0
    %v1536 = vpop.f32.mrf.mxu0
    %v1537 = vadd.f32 %v1281, %v1536
    %v1538 = vpop.f32.mrf.mxu0
    %1539 = vdwg.mxu0
    %1540 = vmatprep.subr.bf16.mxu0 0
    %1541 = vmatpush1.bf16.msra.mxu0 %v1178
    %1542 = vmatprep.subr.bf16.mxu0 0
    %1543 = vmatpush1.bf16.msra.mxu0 %v1177
    %1544 = vmatprep.subr.bf16.mxu0 0
    %1545 = vmatpush1.bf16.msra.mxu0 %v1176
    %1546 = vmatprep.subr.bf16.mxu0 0
    %1547 = vmatpush1.bf16.msra.mxu0 %v1175
    %1548 = vmatprep.subr.bf16.mxu0 0
    %1549 = vmatpush1.bf16.msra.mxu0 %v1174
    %1550 = vmatprep.subr.bf16.mxu0 0
    %1551 = vmatpush1.bf16.msra.mxu0 %v1173
    %1552 = vmatprep.subr.bf16.mxu0 0
    %1553 = vmatpush1.bf16.msra.mxu0 %v1172
    %1554 = vmatprep.subr.bf16.mxu0 0
    %1555 = vmatpush1.bf16.msra.mxu0 %v1171
    %1556 = vmatprep.subr.bf16.mxu0 0
    %1557 = vmatpush2.bf16.msra.mxu0 %v1186
    %1558 = vmatprep.subr.bf16.mxu0 0
    %1559 = vmatpush2.bf16.msra.mxu0 %v1185
    %1560 = vmatprep.subr.bf16.mxu0 0
    %1561 = vmatpush2.bf16.msra.mxu0 %v1184
    %1562 = vmatprep.subr.bf16.mxu0 0
    %1563 = vmatpush2.bf16.msra.mxu0 %v1183
    %1564 = vmatprep.subr.bf16.mxu0 0
    %1565 = vmatpush2.bf16.msra.mxu0 %v1182
    %1566 = vmatprep.subr.bf16.mxu0 0
    %1567 = vmatpush2.bf16.msra.mxu0 %v1181
    %1568 = vmatprep.subr.bf16.mxu0 0
    %1569 = vmatpush2.bf16.msra.mxu0 %v1180
    %1570 = vmatprep.subr.bf16.mxu0 0
    %1571 = vmatpush2.bf16.msra.mxu0 %v1179
    %1572 = vmatprep.mubr.bf16.mxu0 %v1382
    %1573 = vmatmul.mubr.bf16.gmra.mxu0 %v1381
    %v1574 = vpop.f32.mrf.mxu0
    %v1575 = vadd.f32 %v1478, %v1574
    %v1576 = vpop.f32.mrf.mxu0
    %v1577 = vpop.f32.mrf.mxu0
    %v1578 = vadd.f32 %v1481, %v1577
    %v1579 = vpop.f32.mrf.mxu0
    %1580 = vmatprep.mubr.bf16.mxu0 %v1386
    %1581 = vmatmul.mubr.bf16.gmra.mxu0 %v1385
    %v1582 = vpop.f32.mrf.mxu0
    %v1583 = vadd.f32 %v1486, %v1582
    %v1584 = vpop.f32.mrf.mxu0
    %v1585 = vpop.f32.mrf.mxu0
    %v1586 = vadd.f32 %v1489, %v1585
    %v1587 = vpop.f32.mrf.mxu0
    %1588 = vmatprep.mubr.bf16.mxu0 %v1390
    %1589 = vmatmul.mubr.bf16.gmra.mxu0 %v1389
    %v1590 = vpop.f32.mrf.mxu0
    %v1591 = vadd.f32 %v1494, %v1590
    %v1592 = vpop.f32.mrf.mxu0
    %v1593 = vpop.f32.mrf.mxu0
    %v1594 = vadd.f32 %v1497, %v1593
    %v1595 = vpop.f32.mrf.mxu0
    %1596 = vmatprep.mubr.bf16.mxu0 %v1394
    %1597 = vmatmul.mubr.bf16.gmra.mxu0 %v1393
    %v1598 = vpop.f32.mrf.mxu0
    %v1599 = vadd.f32 %v1502, %v1598
    %v1600 = vpop.f32.mrf.mxu0
    %v1601 = vpop.f32.mrf.mxu0
    %v1602 = vadd.f32 %v1505, %v1601
    %v1603 = vpop.f32.mrf.mxu0
    %1604 = vmatprep.mubr.bf16.mxu0 %v1398
    %1605 = vmatmul.mubr.bf16.gmra.mxu0 %v1397
    %v1606 = vpop.f32.mrf.mxu0
    %v1607 = vadd.f32 %v1510, %v1606
    %v1608 = vpop.f32.mrf.mxu0
    %v1609 = vpop.f32.mrf.mxu0
    %v1610 = vadd.f32 %v1513, %v1609
    %v1611 = vpop.f32.mrf.mxu0
    %1612 = vmatprep.mubr.bf16.mxu0 %v1402
    %1613 = vmatmul.mubr.bf16.gmra.mxu0 %v1401
    %v1614 = vpop.f32.mrf.mxu0
    %v1615 = vadd.f32 %v1518, %v1614
    %v1616 = vpop.f32.mrf.mxu0
    %v1617 = vpop.f32.mrf.mxu0
    %v1618 = vadd.f32 %v1521, %v1617
    %v1619 = vpop.f32.mrf.mxu0
    %1620 = vmatprep.mubr.bf16.mxu0 %v1406
    %1621 = vmatmul.mubr.bf16.gmra.mxu0 %v1405
    %v1622 = vpop.f32.mrf.mxu0
    %v1623 = vadd.f32 %v1526, %v1622
    %v1624 = vpop.f32.mrf.mxu0
    %v1625 = vpop.f32.mrf.mxu0
    %v1626 = vadd.f32 %v1529, %v1625
    %v1627 = vpop.f32.mrf.mxu0
    %1628 = vmatprep.mubr.bf16.mxu0 %v1410
    %1629 = vmatmul.mubr.bf16.gmra.mxu0 %v1409
    %v1630 = vpop.f32.mrf.mxu0
    %v1631 = vadd.f32 %v1534, %v1630
    %v1632 = vpop.f32.mrf.mxu0
    %v1633 = vpop.f32.mrf.mxu0
    %v1634 = vadd.f32 %v1537, %v1633
    %v1635 = vpop.f32.mrf.mxu0
    %1636 = vdwg.mxu0
    %v1637 = vmax.f32 %v1575, 0.0
    %v1638 = vmax.f32 %v1578, 0.0
    %v1639 = vmax.f32 %v1583, 0.0
    %v1640 = vmax.f32 %v1586, 0.0
    %v1641 = vmax.f32 %v1591, 0.0
    %v1642 = vmax.f32 %v1594, 0.0
    %v1643 = vmax.f32 %v1599, 0.0
    %v1644 = vmax.f32 %v1602, 0.0
    %v1645 = vmax.f32 %v1607, 0.0
    %v1646 = vmax.f32 %v1610, 0.0
    %v1647 = vmax.f32 %v1615, 0.0
    %v1648 = vmax.f32 %v1618, 0.0
    %v1649 = vmax.f32 %v1623, 0.0
    %v1650 = vmax.f32 %v1626, 0.0
    %v1651 = vmax.f32 %v1631, 0.0
    %v1652 = vmax.f32 %v1634, 0.0
    %v1653 = vld [vmem:[%s5] sm:$0xf]
    %v1654 = vpack.c.bf16 %v1638, %v1637
    %v1655 = vpack.c.bf16 %v1640, %v1639
    %v1656 = vpack.c.bf16 %v1642, %v1641
    %v1657 = vpack.c.bf16 %v1644, %v1643
    %v1658 = vpack.c.bf16 %v1646, %v1645
    %v1659 = vpack.c.bf16 %v1648, %v1647
    %v1660 = vpack.c.bf16 %v1650, %v1649
    %v1661 = vpack.c.bf16 %v1652, %v1651
    %v1662 = vld [vmem:[%s6] sm:$0xff]
    %1664 = vset.pattern.permute.xlu0 0
    %1665 = vperm.xlu0 %1664, %v1662
    %v1666 = vpop.permute.xlu0 %1665
    %1668 = vmatprep.subr.bf16.mxu0 0
    %1669 = vmatpush1.bf16.msra.mxu0 %v1661
    %1670 = vmatprep.subr.bf16.mxu0 0
    %1671 = vmatpush1.bf16.msra.mxu0 %v1660
    %1672 = vmatprep.subr.bf16.mxu0 0
    %1673 = vmatpush1.bf16.msra.mxu0 %v1659
    %1674 = vmatprep.subr.bf16.mxu0 0
    %1675 = vmatpush1.bf16.msra.mxu0 %v1658
    %1676 = vmatprep.subr.bf16.mxu0 0
    %1677 = vmatpush1.bf16.msra.mxu0 %v1657
    %1678 = vmatprep.subr.bf16.mxu0 0
    %1679 = vmatpush1.bf16.msra.mxu0 %v1656
    %1680 = vmatprep.subr.bf16.mxu0 0
    %1681 = vmatpush1.bf16.msra.mxu0 %v1655
    %1682 = vmatprep.subr.bf16.mxu0 0
    %1683 = vmatpush1.bf16.msra.mxu0 %v1654
    %1684 = vmatprep.subr.bf16.mxu0 0
    %1685 = vmatpush2.bf16.msra.mxu0 0
    %1686 = vmatprep.subr.bf16.mxu0 0
    %1687 = vmatpush2.bf16.msra.mxu0 0
    %1688 = vmatprep.subr.bf16.mxu0 0
    %1689 = vmatpush2.bf16.msra.mxu0 0
    %1690 = vmatprep.subr.bf16.mxu0 0
    %1691 = vmatpush2.bf16.msra.mxu0 0
    %1692 = vmatprep.subr.bf16.mxu0 0
    %1693 = vmatpush2.bf16.msra.mxu0 0
    %1694 = vmatprep.subr.bf16.mxu0 0
    %1695 = vmatpush2.bf16.msra.mxu0 0
    %1696 = vmatprep.subr.bf16.mxu0 0
    %1697 = vmatpush2.bf16.msra.mxu0 0
    %1698 = vmatprep.subr.bf16.mxu0 0
    %1699 = vmatpush2.bf16.msra.mxu0 0
    %1700 = vmatprep.mubr.bf16.mxu0 0
    %1701 = vmatmul.mubr.bf16.gmra.mxu0 %v1653
    %v1702 = vpop.f32.mrf.mxu0
    %v1703 = vadd.f32 %v1666, %v1702
    %v1704 = vpop.f32.mrf.mxu0
    %v1705 = vpop.f32.mrf.mxu0
    %v1706 = vpop.f32.mrf.mxu0
    %1707 = vdwg.mxu0
    %1708 = vst [vmem:[#allocation2] sm:$0xff] %v1703
    // Predicated region
    $region30: #{tpu_custom_call.1} parent=1 // pred_check
      _
    $region31: #{tpu_custom_call.1} parent=1 // pred_check_branch
      %1710 = sbr.rel (0) target = $region33
    $region32: #{tpu_custom_call.1} parent=1 // pred_region
      %s1712 = ssub.s32 128, 128
      %1713 = vsyncadd [#allocation3], %s1712
      %s1715 = sshll.u32 [#allocation2], 4
      %s1716 = int_to_ptr.vmem [resolvable:$true] %s1715
      %1718 = dma.vmem_to_hbm [thread:$0]  %s1716, 128, %s7, [#allocation3]
    $region33: #{tpu_custom_call.1} parent=1 // pred_fallthru
      _
    // Predicated region
    $region34: #{tpu_custom_call.1} parent=1 // pred_check
      _
    $region35: #{tpu_custom_call.1} parent=1 // pred_check_branch
      %1720 = sbr.rel (0) target = $region37
    $region36: #{tpu_custom_call.1} parent=1 // pred_region
      %1721 = dma.done [#allocation3], 128
    $region37: #{tpu_custom_call.1} parent=1 // pred_fallthru
      _
    %1722 = vsyncpa [#allocation3], 1

</llo_original>
